<compile_context>
chip_gen: v6e
topology: v6e:2x2x1
jax: 0.10.0
libtpu: 0.0.40
codegen_flags: <defaults>
</compile_context>

<pallas_src>
import functools
import numpy as np

import jax
import jax.numpy as jnp
from jax.experimental import pallas as pl
from jax.experimental.pallas import tpu as pltpu

EPS = 1e-5  # torch.nn.InstanceNorm2d default eps
_PREC = jax.lax.Precision.HIGHEST


def _fused_kernel(*refs, block_cfgs, K, Ho, Wo):
    """One batch sample: the whole chain of detph_blocks, fully in VMEM."""
    p = K // 2
    HW = Ho * Wo
    x_ref, row_ref, col_ref = refs[0], refs[1], refs[2]
    o_ref = refs[-1]

    row = row_ref[...]          # (1, HW) f32: r of flattened pixel r*Wo + c
    col = col_ref[...]          # (1, HW) f32: c of flattened pixel r*Wo + c

    mask_cache = {}

    def _edge_mask(dr, dc):
        """(1, HW) mask of positions whose 2-D source (r-dr, c-dc) is in-plane."""
        key = (dr, dc)
        if key in mask_cache:
            return mask_cache[key]
        m = None
        if dr > 0:
            m = jnp.where(row >= float(dr), 1.0, 0.0)
        elif dr < 0:
            m = jnp.where(row <= float(Ho - 1 + dr), 1.0, 0.0)
        if dc > 0:
            cm = jnp.where(col >= float(dc), 1.0, 0.0)
            m = cm if m is None else m * cm
        elif dc < 0:
            cm = jnp.where(col <= float(Wo - 1 + dc), 1.0, 0.0)
            m = cm if m is None else m * cm
        mask_cache[key] = m
        return m

    def _shift2d(v, dr, dc):
        """out[:, r*Wo + c] = v[:, (r-dr)*Wo + (c-dc)], zero-filled outside.
        Static shift on the flattened lane axis + edge mask (handles both the
        vertical bounds and the horizontal wrap across row boundaries)."""
        if abs(dr) >= Ho or abs(dc) >= Wo:
            return jnp.zeros_like(v)
        s = dr * Wo + dc
        if s > 0:
            z = jnp.zeros(v.shape[:-1] + (s,), v.dtype)
            v = jnp.concatenate([z, v[..., :HW - s]], axis=-1)
        elif s < 0:
            z = jnp.zeros(v.shape[:-1] + (-s,), v.dtype)
            v = jnp.concatenate([v[..., -s:], z], axis=-1)
        m = _edge_mask(dr, dc)
        return v if m is None else v * m

    def _inorm(parts, gamma, beta):
        """Per-channel InstanceNorm over all `parts` (one-pass mean/var, biased)."""
        inv_n = 1.0 / float(len(parts) * HW)
        s1 = parts[0].sum(axis=-1, keepdims=True)
        s2 = (parts[0] * parts[0]).sum(axis=-1, keepdims=True)
        for q in parts[1:]:
            s1 = s1 + q.sum(axis=-1, keepdims=True)
            s2 = s2 + (q * q).sum(axis=-1, keepdims=True)
        mean = s1 * inv_n
        var = jnp.maximum(s2 * inv_n - mean * mean, 0.0)
        scale = gamma * jax.lax.rsqrt(var + EPS)          # (C, 1)
        shift = beta - mean * scale                       # (C, 1)
        return [q * scale + shift for q in parts]

    G0 = block_cfgs[0][4]
    act = [x_ref[g] for g in range(G0)]                   # G0 x (cin, HW)

    pos = 3
    out = None
    for (cin, ce, cout, stride, G) in block_cfgs:
        (w1t, g1, be1, wdw, g2, be2, w2t, g3, be3) = refs[pos:pos + 9]
        pos += 9

        # ---- 1x1 expansion conv (MXU) + InstanceNorm + ReLU6 ---------------
        # (conv biases dropped: constant-per-channel add before InstanceNorm
        #  is a no-op)
        w1 = w1t[...]                                      # (ce, cin)
        y = [jnp.dot(w1, act[g], preferred_element_type=jnp.float32)
             for g in range(G)]
        y = _inorm(y, g1[...], be1[...])
        y = [jnp.clip(v, 0.0, 6.0) for v in y]

        # ---- depthwise KxK conv: shift + mask + MAC on whole (ce, HW) tiles -
        wk = wdw[...]                                      # (K*K, ce, 1)
        acc = None
        for dy in range(K):
            for dx in range(K):
                t = dy * K + dx
                if stride == 1:
                    g, dr, dc = 0, p - dy, p - dx
                else:          # stride == 2: pick parity plane + a 0/-1 shift
                    qr, qc = dy - p, dx - p
                    a, b = qr % 2, qc % 2
                    g = 2 * a + b
                    dr, dc = -((qr - a) // 2), -((qc - b) // 2)
                term = _shift2d(y[g], dr, dc) * wk[t]      # (ce, HW) * (ce, 1)
                acc = term if acc is None else acc + term

        z = jnp.clip(_inorm([acc], g2[...], be2[...])[0], 0.0, 6.0)

        # ---- 1x1 projection conv (MXU) + InstanceNorm -----------------------
        out = jnp.dot(w2t[...], z, preferred_element_type=jnp.float32)
        out = _inorm([out], g3[...], be3[...])[0]
        act = [out]                                        # next block: G == 1

    o_ref[...] = out.astype(o_ref.dtype)


def _init_block_params(key, cin, ce, K, cout):
    ks = jax.random.split(key, 12)
    f32 = jnp.float32
    return dict(
        w1=jax.random.normal(ks[0], (cin, ce), f32) / np.sqrt(cin),
        b1=0.1 * jax.random.normal(ks[1], (ce,), f32),
        g1=1.0 + 0.1 * jax.random.normal(ks[2], (ce,), f32),
        be1=0.1 * jax.random.normal(ks[3], (ce,), f32),
        wdw=jax.random.normal(ks[4], (K * K, ce), f32) / K,
        bdw=0.1 * jax.random.normal(ks[5], (ce,), f32),
        g2=1.0 + 0.1 * jax.random.normal(ks[6], (ce,), f32),
        be2=0.1 * jax.random.normal(ks[7], (ce,), f32),
        w2=jax.random.normal(ks[8], (ce, cout), f32) / np.sqrt(ce),
        b2=0.1 * jax.random.normal(ks[9], (cout,), f32),
        g3=1.0 + 0.1 * jax.random.normal(ks[10], (cout,), f32),
        be3=0.1 * jax.random.normal(ks[11], (cout,), f32),
    )


def _ref_block(x_nhwc, prm, K, stride):
    # pure-JAX reference for one detph_block (NHWC, with conv biases), validation only.
    def inorm(y, g, b):
        m = jnp.mean(y, axis=(1, 2), keepdims=True)
        v = jnp.mean((y - m) ** 2, axis=(1, 2), keepdims=True)
        return (y - m) * jax.lax.rsqrt(v + EPS) * g.reshape(1, 1, 1, -1) + b.reshape(1, 1, 1, -1)

    y = jnp.einsum('nhwc,cd->nhwd', x_nhwc, prm['w1'], precision=_PREC)
    y = y + prm['b1'].reshape(1, 1, 1, -1)
    y = jnp.clip(inorm(y, prm['g1'], prm['be1']), 0.0, 6.0)
    ce = y.shape[-1]
    pad = K // 2
    z = jax.lax.conv_general_dilated(
        y, prm['wdw'].reshape(K, K, 1, ce), (stride, stride),
        [(pad, pad), (pad, pad)],
        dimension_numbers=('NHWC', 'HWIO', 'NHWC'),
        feature_group_count=ce, precision=_PREC)
    z = z + prm['bdw'].reshape(1, 1, 1, -1)
    z = jnp.clip(inorm(z, prm['g2'], prm['be2']), 0.0, 6.0)
    o = jnp.einsum('nhwc,cd->nhwd', z, prm['w2'], precision=_PREC)
    o = o + prm['b2'].reshape(1, 1, 1, -1)
    return inorm(o, prm['g3'], prm['be3'])


def _const_spec(arr):
    """Whole-array VMEM block, identical for every grid step (2-D / 3-D only)."""
    if arr.ndim == 2:
        return pl.BlockSpec(arr.shape, lambda n: (0, 0))
    if arr.ndim == 3:
        return pl.BlockSpec(arr.shape, lambda n: (0, 0, 0))
    raise ValueError(f"unsupported param rank {arr.ndim}")


class DepthWiseBlocksPallas:
    """Pallas TPU port of DetphWiseBlocks (fused forward pass)."""

    def __init__(self, key, in_channel, input_expansion, out_channels, kernel_size,
                 dilation=1, stride=2, number_of_block=1):
        del dilation  # accepted but unused, exactly like the PyTorch module
        if kernel_size % 2 != 1:
            raise NotImplementedError("odd kernel_size only")  # TODO(synk): even kernel sizes
        if stride not in (1, 2):
            raise NotImplementedError("stride must be 1 or 2")  # TODO(synk): generic stride
        self.kernel_size = kernel_size
        cfgs = [(in_channel, stride)] + [(out_channels, 1)] * (number_of_block - 1)
        keys = jax.random.split(key, len(cfgs))
        self.params, self.block_cfg = [], []
        for k, (cin, s) in zip(keys, cfgs):
            ce = int(cin * input_expansion)
            self.params.append(_init_block_params(k, cin, ce, kernel_size, out_channels))
            self.block_cfg.append((cin, ce, out_channels, s, s * s))
        self._fwd = jax.jit(self._forward)   # compiled & cached once per input shape

    def _forward(self, x_nchw, params):
        K = self.kernel_size
        N, Cin, H, W = x_nchw.shape
        s0 = self.block_cfg[0][3]
        if s0 == 2:
            # TODO(synk): odd H/W with stride 2 would need input padding.
            assert H % 2 == 0 and W % 2 == 0, "stride-2 path assumes even H, W"
            Ho, Wo = H // 2, W // 2
            # 2x2 space-to-batch: xp[n, 2a+b, c, i*Wo+j] = x[n, c, 2i+a, 2j+b]
            xp = x_nchw.reshape(N, Cin, Ho, 2, Wo, 2)
            xp = xp.transpose(0, 3, 5, 1, 2, 4).reshape(N, 4, Cin, Ho * Wo)
        else:
            Ho, Wo = H, W
            xp = x_nchw.reshape(N, 1, Cin, H * W)
        HW = Ho * Wo
        cout = self.block_cfg[-1][2]

        # flattened-pixel coordinate planes (shared by every depthwise tap)
        ii = jnp.arange(HW, dtype=jnp.int32)
        row = (ii // Wo).astype(jnp.float32).reshape(1, HW)
        col = (ii % Wo).astype(jnp.float32).reshape(1, HW)

        args = [xp, row, col]
        in_specs = [
            pl.BlockSpec((None,) + xp.shape[1:], lambda n: (n, 0, 0, 0)),
            _const_spec(row), _const_spec(col),
        ]
        for prm, (cin, ce, co, s, G) in zip(params, self.block_cfg):
            blk = [
                prm['w1'].T,                                  # (ce, cin)
                prm['g1'].reshape(ce, 1), prm['be1'].reshape(ce, 1),
                prm['wdw'].reshape(K * K, ce, 1),             # per-tap (ce, 1)
                prm['g2'].reshape(ce, 1), prm['be2'].reshape(ce, 1),
                prm['w2'].T,                                  # (cout, ce)
                prm['g3'].reshape(co, 1), prm['be3'].reshape(co, 1),
            ]
            args += blk
            in_specs += [_const_spec(a) for a in blk]

        kernel = functools.partial(_fused_kernel, block_cfgs=tuple(self.block_cfg),
                                   K=K, Ho=Ho, Wo=Wo)
        out = pl.pallas_call(
            kernel,
            out_shape=jax.ShapeDtypeStruct((N, cout, HW), x_nchw.dtype),
            grid=(N,),
            in_specs=in_specs,
            out_specs=pl.BlockSpec((None, cout, HW), lambda n: (n, 0, 0)),
            compiler_params=pltpu.CompilerParams(
                dimension_semantics=("parallel",)),
        )(*args)
        return out.reshape(N, cout, Ho, Wo)

    def __call__(self, x_nchw):
        return self._fwd(x_nchw, self.params)

    def reference(self, x_nchw):
        x = jnp.transpose(x_nchw, (0, 2, 3, 1))
        for prm, (_, _, _, s, _) in zip(self.params, self.block_cfg):
            x = _ref_block(x, prm, self.kernel_size, s)
        return jnp.transpose(x, (0, 3, 1, 2))


if __name__ == "__main__":
    key = jax.random.PRNGKey(0)
    kp, kx = jax.random.split(key)

    # DetphWiseBlocks(in_channel=4, input_expansion=2, out_channels=8,
    #                 kernel_size=3, stride=2, number_of_block=2)
    model = DepthWiseBlocksPallas(kp, in_channel=4, input_expansion=2, out_channels=8,
                                  kernel_size=3, stride=2, number_of_block=2)

    x = jax.random.normal(kx, (2, 4, 16, 16), jnp.float32)   # NCHW like PyTorch
    out = jax.block_until_ready(model(x))

    assert out.shape == (2, 8, 8, 8), out.shape
    ref = jax.block_until_ready(model.reference(x))
    # 5e-3 tolerance: kernel 1x1 convs run at the MXU's f32 pass precision and
    # InstanceNorm is one-pass, while the reference runs at Precision.HIGHEST.
    np.testing.assert_allclose(np.asarray(out), np.asarray(ref), rtol=5e-3, atol=5e-3)
    print("KERNEL_OK")
</pallas_src>

<mosaic_0001>
module attributes {stable_mosaic.version = 11 : i64} {
  func.func @_fused_kernel(%arg0: i32, %arg1: memref<1x4x4x64xf32, #tpu.memory_space<vmem>>, %arg2: memref<1x64xf32, #tpu.memory_space<vmem>>, %arg3: memref<1x64xf32, #tpu.memory_space<vmem>>, %arg4: memref<8x4xf32, #tpu.memory_space<vmem>>, %arg5: memref<8x1xf32, #tpu.memory_space<vmem>>, %arg6: memref<8x1xf32, #tpu.memory_space<vmem>>, %arg7: memref<9x8x1xf32, #tpu.memory_space<vmem>>, %arg8: memref<8x1xf32, #tpu.memory_space<vmem>>, %arg9: memref<8x1xf32, #tpu.memory_space<vmem>>, %arg10: memref<8x8xf32, #tpu.memory_space<vmem>>, %arg11: memref<8x1xf32, #tpu.memory_space<vmem>>, %arg12: memref<8x1xf32, #tpu.memory_space<vmem>>, %arg13: memref<16x8xf32, #tpu.memory_space<vmem>>, %arg14: memref<16x1xf32, #tpu.memory_space<vmem>>, %arg15: memref<16x1xf32, #tpu.memory_space<vmem>>, %arg16: memref<9x16x1xf32, #tpu.memory_space<vmem>>, %arg17: memref<16x1xf32, #tpu.memory_space<vmem>>, %arg18: memref<16x1xf32, #tpu.memory_space<vmem>>, %arg19: memref<8x16xf32, #tpu.memory_space<vmem>>, %arg20: memref<8x1xf32, #tpu.memory_space<vmem>>, %arg21: memref<8x1xf32, #tpu.memory_space<vmem>>, %arg22: memref<1x8x64xf32, #tpu.memory_space<vmem>>) attributes {dimension_semantics = [#tpu.dimension_semantics<parallel>], iteration_bounds = array<i64: 2>, scalar_prefetch = 0 : i64, scratch_operands = 0 : i64, tpu.core_type = #tpu.core_type<tc>, window_params = [{transform_indices = @transform_0, window_bounds = array<i64: 1, 4, 4, 64>}, {pipeline_mode = #tpu.pipeline_mode<synchronous>, transform_indices = @transform_1, window_bounds = array<i64: 1, 64>}, {pipeline_mode = #tpu.pipeline_mode<synchronous>, transform_indices = @transform_2, window_bounds = array<i64: 1, 64>}, {pipeline_mode = #tpu.pipeline_mode<synchronous>, transform_indices = @transform_3, window_bounds = array<i64: 8, 4>}, {pipeline_mode = #tpu.pipeline_mode<synchronous>, transform_indices = @transform_4, window_bounds = array<i64: 8, 1>}, {pipeline_mode = #tpu.pipeline_mode<synchronous>, transform_indices = @transform_5, window_bounds = array<i64: 8, 1>}, {pipeline_mode = #tpu.pipeline_mode<synchronous>, transform_indices = @transform_6, window_bounds = array<i64: 9, 8, 1>}, {pipeline_mode = #tpu.pipeline_mode<synchronous>, transform_indices = @transform_7, window_bounds = array<i64: 8, 1>}, {pipeline_mode = #tpu.pipeline_mode<synchronous>, transform_indices = @transform_8, window_bounds = array<i64: 8, 1>}, {pipeline_mode = #tpu.pipeline_mode<synchronous>, transform_indices = @transform_9, window_bounds = array<i64: 8, 8>}, {pipeline_mode = #tpu.pipeline_mode<synchronous>, transform_indices = @transform_10, window_bounds = array<i64: 8, 1>}, {pipeline_mode = #tpu.pipeline_mode<synchronous>, transform_indices = @transform_11, window_bounds = array<i64: 8, 1>}, {pipeline_mode = #tpu.pipeline_mode<synchronous>, transform_indices = @transform_12, window_bounds = array<i64: 16, 8>}, {pipeline_mode = #tpu.pipeline_mode<synchronous>, transform_indices = @transform_13, window_bounds = array<i64: 16, 1>}, {pipeline_mode = #tpu.pipeline_mode<synchronous>, transform_indices = @transform_14, window_bounds = array<i64: 16, 1>}, {pipeline_mode = #tpu.pipeline_mode<synchronous>, transform_indices = @transform_15, window_bounds = array<i64: 9, 16, 1>}, {pipeline_mode = #tpu.pipeline_mode<synchronous>, transform_indices = @transform_16, window_bounds = array<i64: 16, 1>}, {pipeline_mode = #tpu.pipeline_mode<synchronous>, transform_indices = @transform_17, window_bounds = array<i64: 16, 1>}, {pipeline_mode = #tpu.pipeline_mode<synchronous>, transform_indices = @transform_18, window_bounds = array<i64: 8, 16>}, {pipeline_mode = #tpu.pipeline_mode<synchronous>, transform_indices = @transform_19, window_bounds = array<i64: 8, 1>}, {pipeline_mode = #tpu.pipeline_mode<synchronous>, transform_indices = @transform_20, window_bounds = array<i64: 8, 1>}, {transform_indices = @transform_21, window_bounds = array<i64: 1, 8, 64>}]} {
    %c0 = arith.constant 0 : index
    %c0_0 = arith.constant 0 : index
    %0 = vector.load %arg2[%c0, %c0_0] : memref<1x64xf32, #tpu.memory_space<vmem>>, vector<1x64xf32>
    %c0_1 = arith.constant 0 : index
    %c0_2 = arith.constant 0 : index
    %1 = vector.load %arg3[%c0_1, %c0_2] : memref<1x64xf32, #tpu.memory_space<vmem>>, vector<1x64xf32>
    %c0_3 = arith.constant 0 : index
    %c0_4 = arith.constant 0 : index
    %c0_5 = arith.constant 0 : index
    %c0_6 = arith.constant 0 : index
    %2 = vector.load %arg1[%c0_3, %c0_4, %c0_5, %c0_6] : memref<1x4x4x64xf32, #tpu.memory_space<vmem>>, vector<1x1x4x64xf32>
    %3 = vector.shape_cast %2 : vector<1x1x4x64xf32> to vector<4x64xf32>
    %c0_7 = arith.constant 0 : index
    %c1 = arith.constant 1 : index
    %c0_8 = arith.constant 0 : index
    %c0_9 = arith.constant 0 : index
    %4 = vector.load %arg1[%c0_7, %c1, %c0_8, %c0_9] : memref<1x4x4x64xf32, #tpu.memory_space<vmem>>, vector<1x1x4x64xf32>
    %5 = vector.shape_cast %4 : vector<1x1x4x64xf32> to vector<4x64xf32>
    %c0_10 = arith.constant 0 : index
    %c2 = arith.constant 2 : index
    %c0_11 = arith.constant 0 : index
    %c0_12 = arith.constant 0 : index
    %6 = vector.load %arg1[%c0_10, %c2, %c0_11, %c0_12] : memref<1x4x4x64xf32, #tpu.memory_space<vmem>>, vector<1x1x4x64xf32>
    %7 = vector.shape_cast %6 : vector<1x1x4x64xf32> to vector<4x64xf32>
    %c0_13 = arith.constant 0 : index
    %c3 = arith.constant 3 : index
    %c0_14 = arith.constant 0 : index
    %c0_15 = arith.constant 0 : index
    %8 = vector.load %arg1[%c0_13, %c3, %c0_14, %c0_15] : memref<1x4x4x64xf32, #tpu.memory_space<vmem>>, vector<1x1x4x64xf32>
    %9 = vector.shape_cast %8 : vector<1x1x4x64xf32> to vector<4x64xf32>
    %c0_16 = arith.constant 0 : index
    %c0_17 = arith.constant 0 : index
    %10 = vector.load %arg4[%c0_16, %c0_17] : memref<8x4xf32, #tpu.memory_space<vmem>>, vector<8x4xf32>
    %cst = arith.constant dense<0.000000e+00> : vector<8x64xf32>
    %11 = tpu.matmul %10, %3, %cst {dimension_numbers = #tpu.dot_dimension_numbers<[1], [0], [0], [1], [0, 0, 1, 1], [], []>} : vector<8x4xf32>, vector<4x64xf32>, vector<8x64xf32> -> vector<8x64xf32>
    %cst_18 = arith.constant dense<0.000000e+00> : vector<8x64xf32>
    %12 = tpu.matmul %10, %5, %cst_18 {dimension_numbers = #tpu.dot_dimension_numbers<[1], [0], [0], [1], [0, 0, 1, 1], [], []>} : vector<8x4xf32>, vector<4x64xf32>, vector<8x64xf32> -> vector<8x64xf32>
    %cst_19 = arith.constant dense<0.000000e+00> : vector<8x64xf32>
    %13 = tpu.matmul %10, %7, %cst_19 {dimension_numbers = #tpu.dot_dimension_numbers<[1], [0], [0], [1], [0, 0, 1, 1], [], []>} : vector<8x4xf32>, vector<4x64xf32>, vector<8x64xf32> -> vector<8x64xf32>
    %cst_20 = arith.constant dense<0.000000e+00> : vector<8x64xf32>
    %14 = tpu.matmul %10, %9, %cst_20 {dimension_numbers = #tpu.dot_dimension_numbers<[1], [0], [0], [1], [0, 0, 1, 1], [], []>} : vector<8x4xf32>, vector<4x64xf32>, vector<8x64xf32> -> vector<8x64xf32>
    %c0_21 = arith.constant 0 : index
    %c0_22 = arith.constant 0 : index
    %15 = vector.load %arg5[%c0_21, %c0_22] : memref<8x1xf32, #tpu.memory_space<vmem>>, vector<8x1xf32>
    %c0_23 = arith.constant 0 : index
    %c0_24 = arith.constant 0 : index
    %16 = vector.load %arg6[%c0_23, %c0_24] : memref<8x1xf32, #tpu.memory_space<vmem>>, vector<8x1xf32>
    %cst_25 = arith.constant dense<0.000000e+00> : vector<8xf32>
    %17 = vector.multi_reduction <add>, %11, %cst_25 [1] : vector<8x64xf32> to vector<8xf32>
    %18 = vector.shape_cast %17 : vector<8xf32> to vector<8x1xf32>
    %19 = arith.mulf %11, %11 : vector<8x64xf32>
    %cst_26 = arith.constant dense<0.000000e+00> : vector<8xf32>
    %20 = vector.multi_reduction <add>, %19, %cst_26 [1] : vector<8x64xf32> to vector<8xf32>
    %21 = vector.shape_cast %20 : vector<8xf32> to vector<8x1xf32>
    %cst_27 = arith.constant dense<0.000000e+00> : vector<8xf32>
    %22 = vector.multi_reduction <add>, %12, %cst_27 [1] : vector<8x64xf32> to vector<8xf32>
    %23 = vector.shape_cast %22 : vector<8xf32> to vector<8x1xf32>
    %24 = arith.addf %18, %23 : vector<8x1xf32>
    %25 = arith.mulf %12, %12 : vector<8x64xf32>
    %cst_28 = arith.constant dense<0.000000e+00> : vector<8xf32>
    %26 = vector.multi_reduction <add>, %25, %cst_28 [1] : vector<8x64xf32> to vector<8xf32>
    %27 = vector.shape_cast %26 : vector<8xf32> to vector<8x1xf32>
    %28 = arith.addf %21, %27 : vector<8x1xf32>
    %cst_29 = arith.constant dense<0.000000e+00> : vector<8xf32>
    %29 = vector.multi_reduction <add>, %13, %cst_29 [1] : vector<8x64xf32> to vector<8xf32>
    %30 = vector.shape_cast %29 : vector<8xf32> to vector<8x1xf32>
    %31 = arith.addf %24, %30 : vector<8x1xf32>
    %32 = arith.mulf %13, %13 : vector<8x64xf32>
    %cst_30 = arith.constant dense<0.000000e+00> : vector<8xf32>
    %33 = vector.multi_reduction <add>, %32, %cst_30 [1] : vector<8x64xf32> to vector<8xf32>
    %34 = vector.shape_cast %33 : vector<8xf32> to vector<8x1xf32>
    %35 = arith.addf %28, %34 : vector<8x1xf32>
    %cst_31 = arith.constant dense<0.000000e+00> : vector<8xf32>
    %36 = vector.multi_reduction <add>, %14, %cst_31 [1] : vector<8x64xf32> to vector<8xf32>
    %37 = vector.shape_cast %36 : vector<8xf32> to vector<8x1xf32>
    %38 = arith.addf %31, %37 : vector<8x1xf32>
    %39 = arith.mulf %14, %14 : vector<8x64xf32>
    %cst_32 = arith.constant dense<0.000000e+00> : vector<8xf32>
    %40 = vector.multi_reduction <add>, %39, %cst_32 [1] : vector<8x64xf32> to vector<8xf32>
    %41 = vector.shape_cast %40 : vector<8xf32> to vector<8x1xf32>
    %42 = arith.addf %35, %41 : vector<8x1xf32>
    %cst_33 = arith.constant 3.906250e-03 : f32
    %43 = vector.broadcast %cst_33 : f32 to vector<8x1xf32>
    %44 = arith.mulf %38, %43 : vector<8x1xf32>
    %cst_34 = arith.constant 3.906250e-03 : f32
    %45 = vector.broadcast %cst_34 : f32 to vector<8x1xf32>
    %46 = arith.mulf %42, %45 : vector<8x1xf32>
    %47 = arith.mulf %44, %44 : vector<8x1xf32>
    %48 = arith.subf %46, %47 : vector<8x1xf32>
    %cst_35 = arith.constant 0.000000e+00 : f32
    %49 = vector.broadcast %cst_35 : f32 to vector<8x1xf32>
    %50 = arith.maximumf %48, %49 : vector<8x1xf32>
    %cst_36 = arith.constant 9.99999974E-6 : f32
    %51 = vector.broadcast %cst_36 : f32 to vector<8x1xf32>
    %52 = arith.addf %50, %51 : vector<8x1xf32>
    %53 = math.rsqrt %52 : vector<8x1xf32>
    %54 = arith.mulf %15, %53 : vector<8x1xf32>
    %55 = arith.mulf %44, %54 : vector<8x1xf32>
    %56 = arith.subf %16, %55 : vector<8x1xf32>
    %57 = vector.broadcast %54 : vector<8x1xf32> to vector<8x64xf32>
    %58 = arith.mulf %11, %57 : vector<8x64xf32>
    %59 = vector.broadcast %56 : vector<8x1xf32> to vector<8x64xf32>
    %60 = arith.addf %58, %59 : vector<8x64xf32>
    %61 = vector.broadcast %54 : vector<8x1xf32> to vector<8x64xf32>
    %62 = arith.mulf %12, %61 : vector<8x64xf32>
    %63 = vector.broadcast %56 : vector<8x1xf32> to vector<8x64xf32>
    %64 = arith.addf %62, %63 : vector<8x64xf32>
    %65 = vector.broadcast %54 : vector<8x1xf32> to vector<8x64xf32>
    %66 = arith.mulf %13, %65 : vector<8x64xf32>
    %67 = vector.broadcast %56 : vector<8x1xf32> to vector<8x64xf32>
    %68 = arith.addf %66, %67 : vector<8x64xf32>
    %69 = vector.broadcast %54 : vector<8x1xf32> to vector<8x64xf32>
    %70 = arith.mulf %14, %69 : vector<8x64xf32>
    %71 = vector.broadcast %56 : vector<8x1xf32> to vector<8x64xf32>
    %72 = arith.addf %70, %71 : vector<8x64xf32>
    %cst_37 = arith.constant 0.000000e+00 : f32
    %cst_38 = arith.constant 6.000000e+00 : f32
    %73 = vector.broadcast %cst_37 : f32 to vector<8x64xf32>
    %74 = arith.maximumf %73, %60 : vector<8x64xf32>
    %75 = vector.broadcast %cst_38 : f32 to vector<8x64xf32>
    %76 = arith.minimumf %75, %74 : vector<8x64xf32>
    %cst_39 = arith.constant 0.000000e+00 : f32
    %cst_40 = arith.constant 6.000000e+00 : f32
    %77 = vector.broadcast %cst_39 : f32 to vector<8x64xf32>
    %78 = arith.maximumf %77, %64 : vector<8x64xf32>
    %79 = vector.broadcast %cst_40 : f32 to vector<8x64xf32>
    %80 = arith.minimumf %79, %78 : vector<8x64xf32>
    %cst_41 = arith.constant 0.000000e+00 : f32
    %cst_42 = arith.constant 6.000000e+00 : f32
    %81 = vector.broadcast %cst_41 : f32 to vector<8x64xf32>
    %82 = arith.maximumf %81, %68 : vector<8x64xf32>
    %83 = vector.broadcast %cst_42 : f32 to vector<8x64xf32>
    %84 = arith.minimumf %83, %82 : vector<8x64xf32>
    %cst_43 = arith.constant 0.000000e+00 : f32
    %cst_44 = arith.constant 6.000000e+00 : f32
    %85 = vector.broadcast %cst_43 : f32 to vector<8x64xf32>
    %86 = arith.maximumf %85, %72 : vector<8x64xf32>
    %87 = vector.broadcast %cst_44 : f32 to vector<8x64xf32>
    %88 = arith.minimumf %87, %86 : vector<8x64xf32>
    %c0_45 = arith.constant 0 : index
    %c0_46 = arith.constant 0 : index
    %c0_47 = arith.constant 0 : index
    %89 = vector.load %arg7[%c0_45, %c0_46, %c0_47] : memref<9x8x1xf32, #tpu.memory_space<vmem>>, vector<9x8x1xf32>
    %cst_48 = arith.constant 0.000000e+00 : f32
    %90 = vector.broadcast %cst_48 : f32 to vector<8x9xf32>
    %91 = vector.extract_strided_slice %88 {offsets = [0, 0], sizes = [8, 55], strides = [1, 1]} : vector<8x64xf32> to vector<8x55xf32>
    %92 = tpu.concatenate %90, %91 in 1 : vector<8x9xf32>, vector<8x55xf32> -> vector<8x64xf32>
    %cst_49 = arith.constant 1.000000e+00 : f32
    %93 = vector.broadcast %cst_49 : f32 to vector<1x64xf32>
    %94 = arith.cmpf oge, %0, %93 : vector<1x64xf32>
    %cst_50 = arith.constant 1.000000e+00 : f32
    %cst_51 = arith.constant 0.000000e+00 : f32
    %95 = vector.broadcast %cst_50 : f32 to vector<1x64xf32>
    %96 = vector.broadcast %cst_51 : f32 to vector<1x64xf32>
    %97 = arith.select %94, %95, %96 : vector<1x64xi1>, vector<1x64xf32>
    %cst_52 = arith.constant 1.000000e+00 : f32
    %98 = vector.broadcast %cst_52 : f32 to vector<1x64xf32>
    %99 = arith.cmpf oge, %1, %98 : vector<1x64xf32>
    %cst_53 = arith.constant 1.000000e+00 : f32
    %cst_54 = arith.constant 0.000000e+00 : f32
    %100 = vector.broadcast %cst_53 : f32 to vector<1x64xf32>
    %101 = vector.broadcast %cst_54 : f32 to vector<1x64xf32>
    %102 = arith.select %99, %100, %101 : vector<1x64xi1>, vector<1x64xf32>
    %103 = arith.mulf %97, %102 : vector<1x64xf32>
    %104 = vector.broadcast %103 : vector<1x64xf32> to vector<8x64xf32>
    %105 = arith.mulf %92, %104 : vector<8x64xf32>
    %106 = vector.extract_strided_slice %89 {offsets = [0, 0, 0], sizes = [1, 8, 1], strides = [1, 1, 1]} : vector<9x8x1xf32> to vector<1x8x1xf32>
    %107 = vector.shape_cast %106 : vector<1x8x1xf32> to vector<8x1xf32>
    %108 = vector.broadcast %107 : vector<8x1xf32> to vector<8x64xf32>
    %109 = arith.mulf %105, %108 : vector<8x64xf32>
    %cst_55 = arith.constant 0.000000e+00 : f32
    %110 = vector.broadcast %cst_55 : f32 to vector<8x8xf32>
    %111 = vector.extract_strided_slice %84 {offsets = [0, 0], sizes = [8, 56], strides = [1, 1]} : vector<8x64xf32> to vector<8x56xf32>
    %112 = tpu.concatenate %110, %111 in 1 : vector<8x8xf32>, vector<8x56xf32> -> vector<8x64xf32>
    %cst_56 = arith.constant 1.000000e+00 : f32
    %113 = vector.broadcast %cst_56 : f32 to vector<1x64xf32>
    %114 = arith.cmpf oge, %0, %113 : vector<1x64xf32>
    %cst_57 = arith.constant 1.000000e+00 : f32
    %cst_58 = arith.constant 0.000000e+00 : f32
    %115 = vector.broadcast %cst_57 : f32 to vector<1x64xf32>
    %116 = vector.broadcast %cst_58 : f32 to vector<1x64xf32>
    %117 = arith.select %114, %115, %116 : vector<1x64xi1>, vector<1x64xf32>
    %118 = vector.broadcast %117 : vector<1x64xf32> to vector<8x64xf32>
    %119 = arith.mulf %112, %118 : vector<8x64xf32>
    %120 = vector.extract_strided_slice %89 {offsets = [1, 0, 0], sizes = [1, 8, 1], strides = [1, 1, 1]} : vector<9x8x1xf32> to vector<1x8x1xf32>
    %121 = vector.shape_cast %120 : vector<1x8x1xf32> to vector<8x1xf32>
    %122 = vector.broadcast %121 : vector<8x1xf32> to vector<8x64xf32>
    %123 = arith.mulf %119, %122 : vector<8x64xf32>
    %124 = arith.addf %109, %123 : vector<8x64xf32>
    %cst_59 = arith.constant 0.000000e+00 : f32
    %125 = vector.broadcast %cst_59 : f32 to vector<8x8xf32>
    %126 = vector.extract_strided_slice %88 {offsets = [0, 0], sizes = [8, 56], strides = [1, 1]} : vector<8x64xf32> to vector<8x56xf32>
    %127 = tpu.concatenate %125, %126 in 1 : vector<8x8xf32>, vector<8x56xf32> -> vector<8x64xf32>
    %128 = vector.broadcast %117 : vector<1x64xf32> to vector<8x64xf32>
    %129 = arith.mulf %127, %128 : vector<8x64xf32>
    %130 = vector.extract_strided_slice %89 {offsets = [2, 0, 0], sizes = [1, 8, 1], strides = [1, 1, 1]} : vector<9x8x1xf32> to vector<1x8x1xf32>
    %131 = vector.shape_cast %130 : vector<1x8x1xf32> to vector<8x1xf32>
    %132 = vector.broadcast %131 : vector<8x1xf32> to vector<8x64xf32>
    %133 = arith.mulf %129, %132 : vector<8x64xf32>
    %134 = arith.addf %124, %133 : vector<8x64xf32>
    %cst_60 = arith.constant 0.000000e+00 : f32
    %135 = vector.broadcast %cst_60 : f32 to vector<8x1xf32>
    %136 = vector.extract_strided_slice %80 {offsets = [0, 0], sizes = [8, 63], strides = [1, 1]} : vector<8x64xf32> to vector<8x63xf32>
    %137 = tpu.concatenate %135, %136 in 1 : vector<8x1xf32>, vector<8x63xf32> -> vector<8x64xf32>
    %cst_61 = arith.constant 1.000000e+00 : f32
    %138 = vector.broadcast %cst_61 : f32 to vector<1x64xf32>
    %139 = arith.cmpf oge, %1, %138 : vector<1x64xf32>
    %cst_62 = arith.constant 1.000000e+00 : f32
    %cst_63 = arith.constant 0.000000e+00 : f32
    %140 = vector.broadcast %cst_62 : f32 to vector<1x64xf32>
    %141 = vector.broadcast %cst_63 : f32 to vector<1x64xf32>
    %142 = arith.select %139, %140, %141 : vector<1x64xi1>, vector<1x64xf32>
    %143 = vector.broadcast %142 : vector<1x64xf32> to vector<8x64xf32>
    %144 = arith.mulf %137, %143 : vector<8x64xf32>
    %145 = vector.extract_strided_slice %89 {offsets = [3, 0, 0], sizes = [1, 8, 1], strides = [1, 1, 1]} : vector<9x8x1xf32> to vector<1x8x1xf32>
    %146 = vector.shape_cast %145 : vector<1x8x1xf32> to vector<8x1xf32>
    %147 = vector.broadcast %146 : vector<8x1xf32> to vector<8x64xf32>
    %148 = arith.mulf %144, %147 : vector<8x64xf32>
    %149 = arith.addf %134, %148 : vector<8x64xf32>
    %150 = vector.extract_strided_slice %89 {offsets = [4, 0, 0], sizes = [1, 8, 1], strides = [1, 1, 1]} : vector<9x8x1xf32> to vector<1x8x1xf32>
    %151 = vector.shape_cast %150 : vector<1x8x1xf32> to vector<8x1xf32>
    %152 = vector.broadcast %151 : vector<8x1xf32> to vector<8x64xf32>
    %153 = arith.mulf %76, %152 : vector<8x64xf32>
    %154 = arith.addf %149, %153 : vector<8x64xf32>
    %155 = vector.extract_strided_slice %89 {offsets = [5, 0, 0], sizes = [1, 8, 1], strides = [1, 1, 1]} : vector<9x8x1xf32> to vector<1x8x1xf32>
    %156 = vector.shape_cast %155 : vector<1x8x1xf32> to vector<8x1xf32>
    %157 = vector.broadcast %156 : vector<8x1xf32> to vector<8x64xf32>
    %158 = arith.mulf %80, %157 : vector<8x64xf32>
    %159 = arith.addf %154, %158 : vector<8x64xf32>
    %cst_64 = arith.constant 0.000000e+00 : f32
    %160 = vector.broadcast %cst_64 : f32 to vector<8x1xf32>
    %161 = vector.extract_strided_slice %88 {offsets = [0, 0], sizes = [8, 63], strides = [1, 1]} : vector<8x64xf32> to vector<8x63xf32>
    %162 = tpu.concatenate %160, %161 in 1 : vector<8x1xf32>, vector<8x63xf32> -> vector<8x64xf32>
    %163 = vector.broadcast %142 : vector<1x64xf32> to vector<8x64xf32>
    %164 = arith.mulf %162, %163 : vector<8x64xf32>
    %165 = vector.extract_strided_slice %89 {offsets = [6, 0, 0], sizes = [1, 8, 1], strides = [1, 1, 1]} : vector<9x8x1xf32> to vector<1x8x1xf32>
    %166 = vector.shape_cast %165 : vector<1x8x1xf32> to vector<8x1xf32>
    %167 = vector.broadcast %166 : vector<8x1xf32> to vector<8x64xf32>
    %168 = arith.mulf %164, %167 : vector<8x64xf32>
    %169 = arith.addf %159, %168 : vector<8x64xf32>
    %170 = vector.extract_strided_slice %89 {offsets = [7, 0, 0], sizes = [1, 8, 1], strides = [1, 1, 1]} : vector<9x8x1xf32> to vector<1x8x1xf32>
    %171 = vector.shape_cast %170 : vector<1x8x1xf32> to vector<8x1xf32>
    %172 = vector.broadcast %171 : vector<8x1xf32> to vector<8x64xf32>
    %173 = arith.mulf %84, %172 : vector<8x64xf32>
    %174 = arith.addf %169, %173 : vector<8x64xf32>
    %175 = vector.extract_strided_slice %89 {offsets = [8, 0, 0], sizes = [1, 8, 1], strides = [1, 1, 1]} : vector<9x8x1xf32> to vector<1x8x1xf32>
    %176 = vector.shape_cast %175 : vector<1x8x1xf32> to vector<8x1xf32>
    %177 = vector.broadcast %176 : vector<8x1xf32> to vector<8x64xf32>
    %178 = arith.mulf %88, %177 : vector<8x64xf32>
    %179 = arith.addf %174, %178 : vector<8x64xf32>
    %c0_65 = arith.constant 0 : index
    %c0_66 = arith.constant 0 : index
    %180 = vector.load %arg8[%c0_65, %c0_66] : memref<8x1xf32, #tpu.memory_space<vmem>>, vector<8x1xf32>
    %c0_67 = arith.constant 0 : index
    %c0_68 = arith.constant 0 : index
    %181 = vector.load %arg9[%c0_67, %c0_68] : memref<8x1xf32, #tpu.memory_space<vmem>>, vector<8x1xf32>
    %cst_69 = arith.constant dense<0.000000e+00> : vector<8xf32>
    %182 = vector.multi_reduction <add>, %179, %cst_69 [1] : vector<8x64xf32> to vector<8xf32>
    %183 = vector.shape_cast %182 : vector<8xf32> to vector<8x1xf32>
    %184 = arith.mulf %179, %179 : vector<8x64xf32>
    %cst_70 = arith.constant dense<0.000000e+00> : vector<8xf32>
    %185 = vector.multi_reduction <add>, %184, %cst_70 [1] : vector<8x64xf32> to vector<8xf32>
    %186 = vector.shape_cast %185 : vector<8xf32> to vector<8x1xf32>
    %cst_71 = arith.constant 1.562500e-02 : f32
    %187 = vector.broadcast %cst_71 : f32 to vector<8x1xf32>
    %188 = arith.mulf %183, %187 : vector<8x1xf32>
    %cst_72 = arith.constant 1.562500e-02 : f32
    %189 = vector.broadcast %cst_72 : f32 to vector<8x1xf32>
    %190 = arith.mulf %186, %189 : vector<8x1xf32>
    %191 = arith.mulf %188, %188 : vector<8x1xf32>
    %192 = arith.subf %190, %191 : vector<8x1xf32>
    %cst_73 = arith.constant 0.000000e+00 : f32
    %193 = vector.broadcast %cst_73 : f32 to vector<8x1xf32>
    %194 = arith.maximumf %192, %193 : vector<8x1xf32>
    %cst_74 = arith.constant 9.99999974E-6 : f32
    %195 = vector.broadcast %cst_74 : f32 to vector<8x1xf32>
    %196 = arith.addf %194, %195 : vector<8x1xf32>
    %197 = math.rsqrt %196 : vector<8x1xf32>
    %198 = arith.mulf %180, %197 : vector<8x1xf32>
    %199 = arith.mulf %188, %198 : vector<8x1xf32>
    %200 = arith.subf %181, %199 : vector<8x1xf32>
    %201 = vector.broadcast %198 : vector<8x1xf32> to vector<8x64xf32>
    %202 = arith.mulf %179, %201 : vector<8x64xf32>
    %203 = vector.broadcast %200 : vector<8x1xf32> to vector<8x64xf32>
    %204 = arith.addf %202, %203 : vector<8x64xf32>
    %cst_75 = arith.constant 0.000000e+00 : f32
    %cst_76 = arith.constant 6.000000e+00 : f32
    %205 = vector.broadcast %cst_75 : f32 to vector<8x64xf32>
    %206 = arith.maximumf %205, %204 : vector<8x64xf32>
    %207 = vector.broadcast %cst_76 : f32 to vector<8x64xf32>
    %208 = arith.minimumf %207, %206 : vector<8x64xf32>
    %c0_77 = arith.constant 0 : index
    %c0_78 = arith.constant 0 : index
    %209 = vector.load %arg10[%c0_77, %c0_78] : memref<8x8xf32, #tpu.memory_space<vmem>>, vector<8x8xf32>
    %cst_79 = arith.constant dense<0.000000e+00> : vector<8x64xf32>
    %210 = tpu.matmul %209, %208, %cst_79 {dimension_numbers = #tpu.dot_dimension_numbers<[1], [0], [0], [1], [0, 0, 1, 1], [], []>} : vector<8x8xf32>, vector<8x64xf32>, vector<8x64xf32> -> vector<8x64xf32>
    %c0_80 = arith.constant 0 : index
    %c0_81 = arith.constant 0 : index
    %211 = vector.load %arg11[%c0_80, %c0_81] : memref<8x1xf32, #tpu.memory_space<vmem>>, vector<8x1xf32>
    %c0_82 = arith.constant 0 : index
    %c0_83 = arith.constant 0 : index
    %212 = vector.load %arg12[%c0_82, %c0_83] : memref<8x1xf32, #tpu.memory_space<vmem>>, vector<8x1xf32>
    %cst_84 = arith.constant dense<0.000000e+00> : vector<8xf32>
    %213 = vector.multi_reduction <add>, %210, %cst_84 [1] : vector<8x64xf32> to vector<8xf32>
    %214 = vector.shape_cast %213 : vector<8xf32> to vector<8x1xf32>
    %215 = arith.mulf %210, %210 : vector<8x64xf32>
    %cst_85 = arith.constant dense<0.000000e+00> : vector<8xf32>
    %216 = vector.multi_reduction <add>, %215, %cst_85 [1] : vector<8x64xf32> to vector<8xf32>
    %217 = vector.shape_cast %216 : vector<8xf32> to vector<8x1xf32>
    %cst_86 = arith.constant 1.562500e-02 : f32
    %218 = vector.broadcast %cst_86 : f32 to vector<8x1xf32>
    %219 = arith.mulf %214, %218 : vector<8x1xf32>
    %cst_87 = arith.constant 1.562500e-02 : f32
    %220 = vector.broadcast %cst_87 : f32 to vector<8x1xf32>
    %221 = arith.mulf %217, %220 : vector<8x1xf32>
    %222 = arith.mulf %219, %219 : vector<8x1xf32>
    %223 = arith.subf %221, %222 : vector<8x1xf32>
    %cst_88 = arith.constant 0.000000e+00 : f32
    %224 = vector.broadcast %cst_88 : f32 to vector<8x1xf32>
    %225 = arith.maximumf %223, %224 : vector<8x1xf32>
    %cst_89 = arith.constant 9.99999974E-6 : f32
    %226 = vector.broadcast %cst_89 : f32 to vector<8x1xf32>
    %227 = arith.addf %225, %226 : vector<8x1xf32>
    %228 = math.rsqrt %227 : vector<8x1xf32>
    %229 = arith.mulf %211, %228 : vector<8x1xf32>
    %230 = arith.mulf %219, %229 : vector<8x1xf32>
    %231 = arith.subf %212, %230 : vector<8x1xf32>
    %232 = vector.broadcast %229 : vector<8x1xf32> to vector<8x64xf32>
    %233 = arith.mulf %210, %232 : vector<8x64xf32>
    %234 = vector.broadcast %231 : vector<8x1xf32> to vector<8x64xf32>
    %235 = arith.addf %233, %234 : vector<8x64xf32>
    %c0_90 = arith.constant 0 : index
    %c0_91 = arith.constant 0 : index
    %236 = vector.load %arg13[%c0_90, %c0_91] : memref<16x8xf32, #tpu.memory_space<vmem>>, vector<16x8xf32>
    %cst_92 = arith.constant dense<0.000000e+00> : vector<16x64xf32>
    %237 = tpu.matmul %236, %235, %cst_92 {dimension_numbers = #tpu.dot_dimension_numbers<[1], [0], [0], [1], [0, 0, 1, 1], [], []>} : vector<16x8xf32>, vector<8x64xf32>, vector<16x64xf32> -> vector<16x64xf32>
    %c0_93 = arith.constant 0 : index
    %c0_94 = arith.constant 0 : index
    %238 = vector.load %arg14[%c0_93, %c0_94] : memref<16x1xf32, #tpu.memory_space<vmem>>, vector<16x1xf32>
    %c0_95 = arith.constant 0 : index
    %c0_96 = arith.constant 0 : index
    %239 = vector.load %arg15[%c0_95, %c0_96] : memref<16x1xf32, #tpu.memory_space<vmem>>, vector<16x1xf32>
    %cst_97 = arith.constant dense<0.000000e+00> : vector<16xf32>
    %240 = vector.multi_reduction <add>, %237, %cst_97 [1] : vector<16x64xf32> to vector<16xf32>
    %241 = vector.shape_cast %240 : vector<16xf32> to vector<16x1xf32>
    %242 = arith.mulf %237, %237 : vector<16x64xf32>
    %cst_98 = arith.constant dense<0.000000e+00> : vector<16xf32>
    %243 = vector.multi_reduction <add>, %242, %cst_98 [1] : vector<16x64xf32> to vector<16xf32>
    %244 = vector.shape_cast %243 : vector<16xf32> to vector<16x1xf32>
    %cst_99 = arith.constant 1.562500e-02 : f32
    %245 = vector.broadcast %cst_99 : f32 to vector<16x1xf32>
    %246 = arith.mulf %241, %245 : vector<16x1xf32>
    %cst_100 = arith.constant 1.562500e-02 : f32
    %247 = vector.broadcast %cst_100 : f32 to vector<16x1xf32>
    %248 = arith.mulf %244, %247 : vector<16x1xf32>
    %249 = arith.mulf %246, %246 : vector<16x1xf32>
    %250 = arith.subf %248, %249 : vector<16x1xf32>
    %cst_101 = arith.constant 0.000000e+00 : f32
    %251 = vector.broadcast %cst_101 : f32 to vector<16x1xf32>
    %252 = arith.maximumf %250, %251 : vector<16x1xf32>
    %cst_102 = arith.constant 9.99999974E-6 : f32
    %253 = vector.broadcast %cst_102 : f32 to vector<16x1xf32>
    %254 = arith.addf %252, %253 : vector<16x1xf32>
    %255 = math.rsqrt %254 : vector<16x1xf32>
    %256 = arith.mulf %238, %255 : vector<16x1xf32>
    %257 = arith.mulf %246, %256 : vector<16x1xf32>
    %258 = arith.subf %239, %257 : vector<16x1xf32>
    %259 = vector.broadcast %256 : vector<16x1xf32> to vector<16x64xf32>
    %260 = arith.mulf %237, %259 : vector<16x64xf32>
    %261 = vector.broadcast %258 : vector<16x1xf32> to vector<16x64xf32>
    %262 = arith.addf %260, %261 : vector<16x64xf32>
    %cst_103 = arith.constant 0.000000e+00 : f32
    %cst_104 = arith.constant 6.000000e+00 : f32
    %263 = vector.broadcast %cst_103 : f32 to vector<16x64xf32>
    %264 = arith.maximumf %263, %262 : vector<16x64xf32>
    %265 = vector.broadcast %cst_104 : f32 to vector<16x64xf32>
    %266 = arith.minimumf %265, %264 : vector<16x64xf32>
    %c0_105 = arith.constant 0 : index
    %c0_106 = arith.constant 0 : index
    %c0_107 = arith.constant 0 : index
    %267 = vector.load %arg16[%c0_105, %c0_106, %c0_107] : memref<9x16x1xf32, #tpu.memory_space<vmem>>, vector<9x16x1xf32>
    %cst_108 = arith.constant 0.000000e+00 : f32
    %268 = vector.broadcast %cst_108 : f32 to vector<16x9xf32>
    %269 = vector.extract_strided_slice %266 {offsets = [0, 0], sizes = [16, 55], strides = [1, 1]} : vector<16x64xf32> to vector<16x55xf32>
    %270 = tpu.concatenate %268, %269 in 1 : vector<16x9xf32>, vector<16x55xf32> -> vector<16x64xf32>
    %271 = vector.broadcast %103 : vector<1x64xf32> to vector<16x64xf32>
    %272 = arith.mulf %270, %271 : vector<16x64xf32>
    %273 = vector.extract_strided_slice %267 {offsets = [0, 0, 0], sizes = [1, 16, 1], strides = [1, 1, 1]} : vector<9x16x1xf32> to vector<1x16x1xf32>
    %274 = vector.shape_cast %273 : vector<1x16x1xf32> to vector<16x1xf32>
    %275 = vector.broadcast %274 : vector<16x1xf32> to vector<16x64xf32>
    %276 = arith.mulf %272, %275 : vector<16x64xf32>
    %cst_109 = arith.constant 0.000000e+00 : f32
    %277 = vector.broadcast %cst_109 : f32 to vector<16x8xf32>
    %278 = vector.extract_strided_slice %266 {offsets = [0, 0], sizes = [16, 56], strides = [1, 1]} : vector<16x64xf32> to vector<16x56xf32>
    %279 = tpu.concatenate %277, %278 in 1 : vector<16x8xf32>, vector<16x56xf32> -> vector<16x64xf32>
    %280 = vector.broadcast %117 : vector<1x64xf32> to vector<16x64xf32>
    %281 = arith.mulf %279, %280 : vector<16x64xf32>
    %282 = vector.extract_strided_slice %267 {offsets = [1, 0, 0], sizes = [1, 16, 1], strides = [1, 1, 1]} : vector<9x16x1xf32> to vector<1x16x1xf32>
    %283 = vector.shape_cast %282 : vector<1x16x1xf32> to vector<16x1xf32>
    %284 = vector.broadcast %283 : vector<16x1xf32> to vector<16x64xf32>
    %285 = arith.mulf %281, %284 : vector<16x64xf32>
    %286 = arith.addf %276, %285 : vector<16x64xf32>
    %cst_110 = arith.constant 0.000000e+00 : f32
    %287 = vector.broadcast %cst_110 : f32 to vector<16x7xf32>
    %288 = vector.extract_strided_slice %266 {offsets = [0, 0], sizes = [16, 57], strides = [1, 1]} : vector<16x64xf32> to vector<16x57xf32>
    %289 = tpu.concatenate %287, %288 in 1 : vector<16x7xf32>, vector<16x57xf32> -> vector<16x64xf32>
    %cst_111 = arith.constant 1.000000e+00 : f32
    %290 = vector.broadcast %cst_111 : f32 to vector<1x64xf32>
    %291 = arith.cmpf oge, %0, %290 : vector<1x64xf32>
    %cst_112 = arith.constant 1.000000e+00 : f32
    %cst_113 = arith.constant 0.000000e+00 : f32
    %292 = vector.broadcast %cst_112 : f32 to vector<1x64xf32>
    %293 = vector.broadcast %cst_113 : f32 to vector<1x64xf32>
    %294 = arith.select %291, %292, %293 : vector<1x64xi1>, vector<1x64xf32>
    %cst_114 = arith.constant 6.000000e+00 : f32
    %295 = vector.broadcast %cst_114 : f32 to vector<1x64xf32>
    %296 = arith.cmpf ole, %1, %295 : vector<1x64xf32>
    %cst_115 = arith.constant 1.000000e+00 : f32
    %cst_116 = arith.constant 0.000000e+00 : f32
    %297 = vector.broadcast %cst_115 : f32 to vector<1x64xf32>
    %298 = vector.broadcast %cst_116 : f32 to vector<1x64xf32>
    %299 = arith.select %296, %297, %298 : vector<1x64xi1>, vector<1x64xf32>
    %300 = arith.mulf %294, %299 : vector<1x64xf32>
    %301 = vector.broadcast %300 : vector<1x64xf32> to vector<16x64xf32>
    %302 = arith.mulf %289, %301 : vector<16x64xf32>
    %303 = vector.extract_strided_slice %267 {offsets = [2, 0, 0], sizes = [1, 16, 1], strides = [1, 1, 1]} : vector<9x16x1xf32> to vector<1x16x1xf32>
    %304 = vector.shape_cast %303 : vector<1x16x1xf32> to vector<16x1xf32>
    %305 = vector.broadcast %304 : vector<16x1xf32> to vector<16x64xf32>
    %306 = arith.mulf %302, %305 : vector<16x64xf32>
    %307 = arith.addf %286, %306 : vector<16x64xf32>
    %cst_117 = arith.constant 0.000000e+00 : f32
    %308 = vector.broadcast %cst_117 : f32 to vector<16x1xf32>
    %309 = vector.extract_strided_slice %266 {offsets = [0, 0], sizes = [16, 63], strides = [1, 1]} : vector<16x64xf32> to vector<16x63xf32>
    %310 = tpu.concatenate %308, %309 in 1 : vector<16x1xf32>, vector<16x63xf32> -> vector<16x64xf32>
    %311 = vector.broadcast %142 : vector<1x64xf32> to vector<16x64xf32>
    %312 = arith.mulf %310, %311 : vector<16x64xf32>
    %313 = vector.extract_strided_slice %267 {offsets = [3, 0, 0], sizes = [1, 16, 1], strides = [1, 1, 1]} : vector<9x16x1xf32> to vector<1x16x1xf32>
    %314 = vector.shape_cast %313 : vector<1x16x1xf32> to vector<16x1xf32>
    %315 = vector.broadcast %314 : vector<16x1xf32> to vector<16x64xf32>
    %316 = arith.mulf %312, %315 : vector<16x64xf32>
    %317 = arith.addf %307, %316 : vector<16x64xf32>
    %318 = vector.extract_strided_slice %267 {offsets = [4, 0, 0], sizes = [1, 16, 1], strides = [1, 1, 1]} : vector<9x16x1xf32> to vector<1x16x1xf32>
    %319 = vector.shape_cast %318 : vector<1x16x1xf32> to vector<16x1xf32>
    %320 = vector.broadcast %319 : vector<16x1xf32> to vector<16x64xf32>
    %321 = arith.mulf %266, %320 : vector<16x64xf32>
    %322 = arith.addf %317, %321 : vector<16x64xf32>
    %cst_118 = arith.constant 0.000000e+00 : f32
    %323 = vector.broadcast %cst_118 : f32 to vector<16x1xf32>
    %324 = vector.extract_strided_slice %266 {offsets = [0, 1], sizes = [16, 63], strides = [1, 1]} : vector<16x64xf32> to vector<16x63xf32>
    %325 = tpu.concatenate %324, %323 in 1 : vector<16x63xf32>, vector<16x1xf32> -> vector<16x64xf32>
    %cst_119 = arith.constant 6.000000e+00 : f32
    %326 = vector.broadcast %cst_119 : f32 to vector<1x64xf32>
    %327 = arith.cmpf ole, %1, %326 : vector<1x64xf32>
    %cst_120 = arith.constant 1.000000e+00 : f32
    %cst_121 = arith.constant 0.000000e+00 : f32
    %328 = vector.broadcast %cst_120 : f32 to vector<1x64xf32>
    %329 = vector.broadcast %cst_121 : f32 to vector<1x64xf32>
    %330 = arith.select %327, %328, %329 : vector<1x64xi1>, vector<1x64xf32>
    %331 = vector.broadcast %330 : vector<1x64xf32> to vector<16x64xf32>
    %332 = arith.mulf %325, %331 : vector<16x64xf32>
    %333 = vector.extract_strided_slice %267 {offsets = [5, 0, 0], sizes = [1, 16, 1], strides = [1, 1, 1]} : vector<9x16x1xf32> to vector<1x16x1xf32>
    %334 = vector.shape_cast %333 : vector<1x16x1xf32> to vector<16x1xf32>
    %335 = vector.broadcast %334 : vector<16x1xf32> to vector<16x64xf32>
    %336 = arith.mulf %332, %335 : vector<16x64xf32>
    %337 = arith.addf %322, %336 : vector<16x64xf32>
    %cst_122 = arith.constant 0.000000e+00 : f32
    %338 = vector.broadcast %cst_122 : f32 to vector<16x7xf32>
    %339 = vector.extract_strided_slice %266 {offsets = [0, 7], sizes = [16, 57], strides = [1, 1]} : vector<16x64xf32> to vector<16x57xf32>
    %340 = tpu.concatenate %339, %338 in 1 : vector<16x57xf32>, vector<16x7xf32> -> vector<16x64xf32>
    %cst_123 = arith.constant 6.000000e+00 : f32
    %341 = vector.broadcast %cst_123 : f32 to vector<1x64xf32>
    %342 = arith.cmpf ole, %0, %341 : vector<1x64xf32>
    %cst_124 = arith.constant 1.000000e+00 : f32
    %cst_125 = arith.constant 0.000000e+00 : f32
    %343 = vector.broadcast %cst_124 : f32 to vector<1x64xf32>
    %344 = vector.broadcast %cst_125 : f32 to vector<1x64xf32>
    %345 = arith.select %342, %343, %344 : vector<1x64xi1>, vector<1x64xf32>
    %cst_126 = arith.constant 1.000000e+00 : f32
    %346 = vector.broadcast %cst_126 : f32 to vector<1x64xf32>
    %347 = arith.cmpf oge, %1, %346 : vector<1x64xf32>
    %cst_127 = arith.constant 1.000000e+00 : f32
    %cst_128 = arith.constant 0.000000e+00 : f32
    %348 = vector.broadcast %cst_127 : f32 to vector<1x64xf32>
    %349 = vector.broadcast %cst_128 : f32 to vector<1x64xf32>
    %350 = arith.select %347, %348, %349 : vector<1x64xi1>, vector<1x64xf32>
    %351 = arith.mulf %345, %350 : vector<1x64xf32>
    %352 = vector.broadcast %351 : vector<1x64xf32> to vector<16x64xf32>
    %353 = arith.mulf %340, %352 : vector<16x64xf32>
    %354 = vector.extract_strided_slice %267 {offsets = [6, 0, 0], sizes = [1, 16, 1], strides = [1, 1, 1]} : vector<9x16x1xf32> to vector<1x16x1xf32>
    %355 = vector.shape_cast %354 : vector<1x16x1xf32> to vector<16x1xf32>
    %356 = vector.broadcast %355 : vector<16x1xf32> to vector<16x64xf32>
    %357 = arith.mulf %353, %356 : vector<16x64xf32>
    %358 = arith.addf %337, %357 : vector<16x64xf32>
    %cst_129 = arith.constant 0.000000e+00 : f32
    %359 = vector.broadcast %cst_129 : f32 to vector<16x8xf32>
    %360 = vector.extract_strided_slice %266 {offsets = [0, 8], sizes = [16, 56], strides = [1, 1]} : vector<16x64xf32> to vector<16x56xf32>
    %361 = tpu.concatenate %360, %359 in 1 : vector<16x56xf32>, vector<16x8xf32> -> vector<16x64xf32>
    %cst_130 = arith.constant 6.000000e+00 : f32
    %362 = vector.broadcast %cst_130 : f32 to vector<1x64xf32>
    %363 = arith.cmpf ole, %0, %362 : vector<1x64xf32>
    %cst_131 = arith.constant 1.000000e+00 : f32
    %cst_132 = arith.constant 0.000000e+00 : f32
    %364 = vector.broadcast %cst_131 : f32 to vector<1x64xf32>
    %365 = vector.broadcast %cst_132 : f32 to vector<1x64xf32>
    %366 = arith.select %363, %364, %365 : vector<1x64xi1>, vector<1x64xf32>
    %367 = vector.broadcast %366 : vector<1x64xf32> to vector<16x64xf32>
    %368 = arith.mulf %361, %367 : vector<16x64xf32>
    %369 = vector.extract_strided_slice %267 {offsets = [7, 0, 0], sizes = [1, 16, 1], strides = [1, 1, 1]} : vector<9x16x1xf32> to vector<1x16x1xf32>
    %370 = vector.shape_cast %369 : vector<1x16x1xf32> to vector<16x1xf32>
    %371 = vector.broadcast %370 : vector<16x1xf32> to vector<16x64xf32>
    %372 = arith.mulf %368, %371 : vector<16x64xf32>
    %373 = arith.addf %358, %372 : vector<16x64xf32>
    %cst_133 = arith.constant 0.000000e+00 : f32
    %374 = vector.broadcast %cst_133 : f32 to vector<16x9xf32>
    %375 = vector.extract_strided_slice %266 {offsets = [0, 9], sizes = [16, 55], strides = [1, 1]} : vector<16x64xf32> to vector<16x55xf32>
    %376 = tpu.concatenate %375, %374 in 1 : vector<16x55xf32>, vector<16x9xf32> -> vector<16x64xf32>
    %cst_134 = arith.constant 6.000000e+00 : f32
    %377 = vector.broadcast %cst_134 : f32 to vector<1x64xf32>
    %378 = arith.cmpf ole, %0, %377 : vector<1x64xf32>
    %cst_135 = arith.constant 1.000000e+00 : f32
    %cst_136 = arith.constant 0.000000e+00 : f32
    %379 = vector.broadcast %cst_135 : f32 to vector<1x64xf32>
    %380 = vector.broadcast %cst_136 : f32 to vector<1x64xf32>
    %381 = arith.select %378, %379, %380 : vector<1x64xi1>, vector<1x64xf32>
    %cst_137 = arith.constant 6.000000e+00 : f32
    %382 = vector.broadcast %cst_137 : f32 to vector<1x64xf32>
    %383 = arith.cmpf ole, %1, %382 : vector<1x64xf32>
    %cst_138 = arith.constant 1.000000e+00 : f32
    %cst_139 = arith.constant 0.000000e+00 : f32
    %384 = vector.broadcast %cst_138 : f32 to vector<1x64xf32>
    %385 = vector.broadcast %cst_139 : f32 to vector<1x64xf32>
    %386 = arith.select %383, %384, %385 : vector<1x64xi1>, vector<1x64xf32>
    %387 = arith.mulf %381, %386 : vector<1x64xf32>
    %388 = vector.broadcast %387 : vector<1x64xf32> to vector<16x64xf32>
    %389 = arith.mulf %376, %388 : vector<16x64xf32>
    %390 = vector.extract_strided_slice %267 {offsets = [8, 0, 0], sizes = [1, 16, 1], strides = [1, 1, 1]} : vector<9x16x1xf32> to vector<1x16x1xf32>
    %391 = vector.shape_cast %390 : vector<1x16x1xf32> to vector<16x1xf32>
    %392 = vector.broadcast %391 : vector<16x1xf32> to vector<16x64xf32>
    %393 = arith.mulf %389, %392 : vector<16x64xf32>
    %394 = arith.addf %373, %393 : vector<16x64xf32>
    %c0_140 = arith.constant 0 : index
    %c0_141 = arith.constant 0 : index
    %395 = vector.load %arg17[%c0_140, %c0_141] : memref<16x1xf32, #tpu.memory_space<vmem>>, vector<16x1xf32>
    %c0_142 = arith.constant 0 : index
    %c0_143 = arith.constant 0 : index
    %396 = vector.load %arg18[%c0_142, %c0_143] : memref<16x1xf32, #tpu.memory_space<vmem>>, vector<16x1xf32>
    %cst_144 = arith.constant dense<0.000000e+00> : vector<16xf32>
    %397 = vector.multi_reduction <add>, %394, %cst_144 [1] : vector<16x64xf32> to vector<16xf32>
    %398 = vector.shape_cast %397 : vector<16xf32> to vector<16x1xf32>
    %399 = arith.mulf %394, %394 : vector<16x64xf32>
    %cst_145 = arith.constant dense<0.000000e+00> : vector<16xf32>
    %400 = vector.multi_reduction <add>, %399, %cst_145 [1] : vector<16x64xf32> to vector<16xf32>
    %401 = vector.shape_cast %400 : vector<16xf32> to vector<16x1xf32>
    %cst_146 = arith.constant 1.562500e-02 : f32
    %402 = vector.broadcast %cst_146 : f32 to vector<16x1xf32>
    %403 = arith.mulf %398, %402 : vector<16x1xf32>
    %cst_147 = arith.constant 1.562500e-02 : f32
    %404 = vector.broadcast %cst_147 : f32 to vector<16x1xf32>
    %405 = arith.mulf %401, %404 : vector<16x1xf32>
    %406 = arith.mulf %403, %403 : vector<16x1xf32>
    %407 = arith.subf %405, %406 : vector<16x1xf32>
    %cst_148 = arith.constant 0.000000e+00 : f32
    %408 = vector.broadcast %cst_148 : f32 to vector<16x1xf32>
    %409 = arith.maximumf %407, %408 : vector<16x1xf32>
    %cst_149 = arith.constant 9.99999974E-6 : f32
    %410 = vector.broadcast %cst_149 : f32 to vector<16x1xf32>
    %411 = arith.addf %409, %410 : vector<16x1xf32>
    %412 = math.rsqrt %411 : vector<16x1xf32>
    %413 = arith.mulf %395, %412 : vector<16x1xf32>
    %414 = arith.mulf %403, %413 : vector<16x1xf32>
    %415 = arith.subf %396, %414 : vector<16x1xf32>
    %416 = vector.broadcast %413 : vector<16x1xf32> to vector<16x64xf32>
    %417 = arith.mulf %394, %416 : vector<16x64xf32>
    %418 = vector.broadcast %415 : vector<16x1xf32> to vector<16x64xf32>
    %419 = arith.addf %417, %418 : vector<16x64xf32>
    %cst_150 = arith.constant 0.000000e+00 : f32
    %cst_151 = arith.constant 6.000000e+00 : f32
    %420 = vector.broadcast %cst_150 : f32 to vector<16x64xf32>
    %421 = arith.maximumf %420, %419 : vector<16x64xf32>
    %422 = vector.broadcast %cst_151 : f32 to vector<16x64xf32>
    %423 = arith.minimumf %422, %421 : vector<16x64xf32>
    %c0_152 = arith.constant 0 : index
    %c0_153 = arith.constant 0 : index
    %424 = vector.load %arg19[%c0_152, %c0_153] : memref<8x16xf32, #tpu.memory_space<vmem>>, vector<8x16xf32>
    %cst_154 = arith.constant dense<0.000000e+00> : vector<8x64xf32>
    %425 = tpu.matmul %424, %423, %cst_154 {dimension_numbers = #tpu.dot_dimension_numbers<[1], [0], [0], [1], [0, 0, 1, 1], [], []>} : vector<8x16xf32>, vector<16x64xf32>, vector<8x64xf32> -> vector<8x64xf32>
    %c0_155 = arith.constant 0 : index
    %c0_156 = arith.constant 0 : index
    %426 = vector.load %arg20[%c0_155, %c0_156] : memref<8x1xf32, #tpu.memory_space<vmem>>, vector<8x1xf32>
    %c0_157 = arith.constant 0 : index
    %c0_158 = arith.constant 0 : index
    %427 = vector.load %arg21[%c0_157, %c0_158] : memref<8x1xf32, #tpu.memory_space<vmem>>, vector<8x1xf32>
    %cst_159 = arith.constant dense<0.000000e+00> : vector<8xf32>
    %428 = vector.multi_reduction <add>, %425, %cst_159 [1] : vector<8x64xf32> to vector<8xf32>
    %429 = vector.shape_cast %428 : vector<8xf32> to vector<8x1xf32>
    %430 = arith.mulf %425, %425 : vector<8x64xf32>
    %cst_160 = arith.constant dense<0.000000e+00> : vector<8xf32>
    %431 = vector.multi_reduction <add>, %430, %cst_160 [1] : vector<8x64xf32> to vector<8xf32>
    %432 = vector.shape_cast %431 : vector<8xf32> to vector<8x1xf32>
    %cst_161 = arith.constant 1.562500e-02 : f32
    %433 = vector.broadcast %cst_161 : f32 to vector<8x1xf32>
    %434 = arith.mulf %429, %433 : vector<8x1xf32>
    %cst_162 = arith.constant 1.562500e-02 : f32
    %435 = vector.broadcast %cst_162 : f32 to vector<8x1xf32>
    %436 = arith.mulf %432, %435 : vector<8x1xf32>
    %437 = arith.mulf %434, %434 : vector<8x1xf32>
    %438 = arith.subf %436, %437 : vector<8x1xf32>
    %cst_163 = arith.constant 0.000000e+00 : f32
    %439 = vector.broadcast %cst_163 : f32 to vector<8x1xf32>
    %440 = arith.maximumf %438, %439 : vector<8x1xf32>
    %cst_164 = arith.constant 9.99999974E-6 : f32
    %441 = vector.broadcast %cst_164 : f32 to vector<8x1xf32>
    %442 = arith.addf %440, %441 : vector<8x1xf32>
    %443 = math.rsqrt %442 : vector<8x1xf32>
    %444 = arith.mulf %426, %443 : vector<8x1xf32>
    %445 = arith.mulf %434, %444 : vector<8x1xf32>
    %446 = arith.subf %427, %445 : vector<8x1xf32>
    %447 = vector.broadcast %444 : vector<8x1xf32> to vector<8x64xf32>
    %448 = arith.mulf %425, %447 : vector<8x64xf32>
    %449 = vector.broadcast %446 : vector<8x1xf32> to vector<8x64xf32>
    %450 = arith.addf %448, %449 : vector<8x64xf32>
    %c0_165 = arith.constant 0 : index
    %c0_166 = arith.constant 0 : index
    %c0_167 = arith.constant 0 : index
    %451 = vector.load %arg22[%c0_165, %c0_166, %c0_167] : memref<1x8x64xf32, #tpu.memory_space<vmem>>, vector<1x8x64xf32>
    %452 = vector.shape_cast %451 : vector<1x8x64xf32> to vector<8x64xf32>
    %453 = vector.shape_cast %450 : vector<8x64xf32> to vector<1x8x64xf32>
    tpu.vector_store %arg22[%c0_165, %c0_166, %c0_167], %453 {strides = array<i32>} : memref<1x8x64xf32, #tpu.memory_space<vmem>>, vector<1x8x64xf32>,
    return
  }
  func.func @transform_0(%arg0: i32) -> (i32, i32, i32, i32) {
    %c0_i32 = arith.constant 0 : i32
    %c0_i32_0 = arith.constant 0 : i32
    %c0_i32_1 = arith.constant 0 : i32
    %c0_i32_2 = arith.constant 0 : i32
    return %arg0, %c0_i32, %c0_i32_0, %c0_i32_1 : i32, i32, i32, i32
  }
  func.func @transform_1(%arg0: i32) -> (i32, i32) {
    %c0_i32 = arith.constant 0 : i32
    %c0_i32_0 = arith.constant 0 : i32
    %c0_i32_1 = arith.constant 0 : i32
    return %c0_i32, %c0_i32_0 : i32, i32
  }
  func.func @transform_2(%arg0: i32) -> (i32, i32) {
    %c0_i32 = arith.constant 0 : i32
    %c0_i32_0 = arith.constant 0 : i32
    %c0_i32_1 = arith.constant 0 : i32
    return %c0_i32, %c0_i32_0 : i32, i32
  }
  func.func @transform_3(%arg0: i32) -> (i32, i32) {
    %c0_i32 = arith.constant 0 : i32
    %c0_i32_0 = arith.constant 0 : i32
    %c0_i32_1 = arith.constant 0 : i32
    return %c0_i32, %c0_i32_0 : i32, i32
  }
  func.func @transform_4(%arg0: i32) -> (i32, i32) {
    %c0_i32 = arith.constant 0 : i32
    %c0_i32_0 = arith.constant 0 : i32
    %c0_i32_1 = arith.constant 0 : i32
    return %c0_i32, %c0_i32_0 : i32, i32
  }
  func.func @transform_5(%arg0: i32) -> (i32, i32) {
    %c0_i32 = arith.constant 0 : i32
    %c0_i32_0 = arith.constant 0 : i32
    %c0_i32_1 = arith.constant 0 : i32
    return %c0_i32, %c0_i32_0 : i32, i32
  }
  func.func @transform_6(%arg0: i32) -> (i32, i32, i32) {
    %c0_i32 = arith.constant 0 : i32
    %c0_i32_0 = arith.constant 0 : i32
    %c0_i32_1 = arith.constant 0 : i32
    %c0_i32_2 = arith.constant 0 : i32
    return %c0_i32, %c0_i32_0, %c0_i32_1 : i32, i32, i32
  }
  func.func @transform_7(%arg0: i32) -> (i32, i32) {
    %c0_i32 = arith.constant 0 : i32
    %c0_i32_0 = arith.constant 0 : i32
    %c0_i32_1 = arith.constant 0 : i32
    return %c0_i32, %c0_i32_0 : i32, i32
  }
  func.func @transform_8(%arg0: i32) -> (i32, i32) {
    %c0_i32 = arith.constant 0 : i32
    %c0_i32_0 = arith.constant 0 : i32
    %c0_i32_1 = arith.constant 0 : i32
    return %c0_i32, %c0_i32_0 : i32, i32
  }
  func.func @transform_9(%arg0: i32) -> (i32, i32) {
    %c0_i32 = arith.constant 0 : i32
    %c0_i32_0 = arith.constant 0 : i32
    %c0_i32_1 = arith.constant 0 : i32
    return %c0_i32, %c0_i32_0 : i32, i32
  }
  func.func @transform_10(%arg0: i32) -> (i32, i32) {
    %c0_i32 = arith.constant 0 : i32
    %c0_i32_0 = arith.constant 0 : i32
    %c0_i32_1 = arith.constant 0 : i32
    return %c0_i32, %c0_i32_0 : i32, i32
  }
  func.func @transform_11(%arg0: i32) -> (i32, i32) {
    %c0_i32 = arith.constant 0 : i32
    %c0_i32_0 = arith.constant 0 : i32
    %c0_i32_1 = arith.constant 0 : i32
    return %c0_i32, %c0_i32_0 : i32, i32
  }
  func.func @transform_12(%arg0: i32) -> (i32, i32) {
    %c0_i32 = arith.constant 0 : i32
    %c0_i32_0 = arith.constant 0 : i32
    %c0_i32_1 = arith.constant 0 : i32
    return %c0_i32, %c0_i32_0 : i32, i32
  }
  func.func @transform_13(%arg0: i32) -> (i32, i32) {
    %c0_i32 = arith.constant 0 : i32
    %c0_i32_0 = arith.constant 0 : i32
    %c0_i32_1 = arith.constant 0 : i32
    return %c0_i32, %c0_i32_0 : i32, i32
  }
  func.func @transform_14(%arg0: i32) -> (i32, i32) {
    %c0_i32 = arith.constant 0 : i32
    %c0_i32_0 = arith.constant 0 : i32
    %c0_i32_1 = arith.constant 0 : i32
    return %c0_i32, %c0_i32_0 : i32, i32
  }
  func.func @transform_15(%arg0: i32) -> (i32, i32, i32) {
    %c0_i32 = arith.constant 0 : i32
    %c0_i32_0 = arith.constant 0 : i32
    %c0_i32_1 = arith.constant 0 : i32
    %c0_i32_2 = arith.constant 0 : i32
    return %c0_i32, %c0_i32_0, %c0_i32_1 : i32, i32, i32
  }
  func.func @transform_16(%arg0: i32) -> (i32, i32) {
    %c0_i32 = arith.constant 0 : i32
    %c0_i32_0 = arith.constant 0 : i32
    %c0_i32_1 = arith.constant 0 : i32
    return %c0_i32, %c0_i32_0 : i32, i32
  }
  func.func @transform_17(%arg0: i32) -> (i32, i32) {
    %c0_i32 = arith.constant 0 : i32
    %c0_i32_0 = arith.constant 0 : i32
    %c0_i32_1 = arith.constant 0 : i32
    return %c0_i32, %c0_i32_0 : i32, i32
  }
  func.func @transform_18(%arg0: i32) -> (i32, i32) {
    %c0_i32 = arith.constant 0 : i32
    %c0_i32_0 = arith.constant 0 : i32
    %c0_i32_1 = arith.constant 0 : i32
    return %c0_i32, %c0_i32_0 : i32, i32
  }
  func.func @transform_19(%arg0: i32) -> (i32, i32) {
    %c0_i32 = arith.constant 0 : i32
    %c0_i32_0 = arith.constant 0 : i32
    %c0_i32_1 = arith.constant 0 : i32
    return %c0_i32, %c0_i32_0 : i32, i32
  }
  func.func @transform_20(%arg0: i32) -> (i32, i32) {
    %c0_i32 = arith.constant 0 : i32
    %c0_i32_0 = arith.constant 0 : i32
    %c0_i32_1 = arith.constant 0 : i32
    return %c0_i32, %c0_i32_0 : i32, i32
  }
  func.func @transform_21(%arg0: i32) -> (i32, i32, i32) {
    %c0_i32 = arith.constant 0 : i32
    %c0_i32_0 = arith.constant 0 : i32
    %c0_i32_1 = arith.constant 0 : i32
    return %arg0, %c0_i32, %c0_i32_0 : i32, i32, i32
  }
}

</mosaic_0001>

<llo_original>
// kernel: _forward.1
$region0: #{_forward.1}
  #allocation0 [shape = 'u32[]', space=smem, size = 0x4, offset = 0x4, fixed_abs, tag = 'smem constant byte address 0x4 - core index']
  #allocation1 [shape = 'u32[144,128]{1,0:T(1,128)}', space=vmem, size = 0x12000, scoped, tag = 'internal scratch']
  %s0 = inlined_call_operand.vmem [shape: f32[2,4,4,64], index: 0, kind: input, shape index: {}]
  %s1 = inlined_call_operand.vmem [shape: f32[1,64], index: 1, kind: input, shape index: {}]
  %s2 = inlined_call_operand.vmem [shape: f32[1,64], index: 2, kind: input, shape index: {}]
  %s3 = inlined_call_operand.vmem [shape: f32[8,4], index: 3, kind: input, shape index: {}]
  %s4 = inlined_call_operand.vmem [shape: f32[8,1], index: 4, kind: input, shape index: {}]
  %s5 = inlined_call_operand.vmem [shape: f32[8,1], index: 5, kind: input, shape index: {}]
  %s6 = inlined_call_operand.vmem [shape: f32[9,8,1], index: 6, kind: input, shape index: {}]
  %s7 = inlined_call_operand.vmem [shape: f32[8,1], index: 7, kind: input, shape index: {}]
  %s8 = inlined_call_operand.vmem [shape: f32[8,1], index: 8, kind: input, shape index: {}]
  %s9 = inlined_call_operand.vmem [shape: f32[8,8], index: 9, kind: input, shape index: {}]
  %s10 = inlined_call_operand.vmem [shape: f32[8,1], index: 10, kind: input, shape index: {}]
  %s11 = inlined_call_operand.vmem [shape: f32[8,1], index: 11, kind: input, shape index: {}]
  %s12 = inlined_call_operand.vmem [shape: f32[16,8], index: 12, kind: input, shape index: {}]
  %s13 = inlined_call_operand.vmem [shape: f32[16,1], index: 13, kind: input, shape index: {}]
  %s14 = inlined_call_operand.vmem [shape: f32[16,1], index: 14, kind: input, shape index: {}]
  %s15 = inlined_call_operand.vmem [shape: f32[9,16,1], index: 15, kind: input, shape index: {}]
  %s16 = inlined_call_operand.vmem [shape: f32[16,1], index: 16, kind: input, shape index: {}]
  %s17 = inlined_call_operand.vmem [shape: f32[16,1], index: 17, kind: input, shape index: {}]
  %s18 = inlined_call_operand.vmem [shape: f32[8,16], index: 18, kind: input, shape index: {}]
  %s19 = inlined_call_operand.vmem [shape: f32[8,1], index: 19, kind: input, shape index: {}]
  %s20 = inlined_call_operand.vmem [shape: f32[8,1], index: 20, kind: input, shape index: {}]
  %s21 = inlined_call_operand.vmem [shape: f32[2,8,64], index: 21, kind: output, shape index: {}]
  %s22 = sld [smem:[#allocation0]]
  $region117: #{_forward.1} parent=0
    _
  %s24 = ssub.s32 1, %s22
  %s25 = scalar_select 0, %s24, %s22
  loop: start=0, step=1, limit=4
  $region2: #{_forward.1} parent=0 // loop_pre_header
    _
  $region3: #{_forward.1} parent=0 // loop_header
    %s27 = sphi 0, %s31
    %p28 = scmp.ge.s32.totalorder %s27, 4
    %s37 = sphi 0, %s39
    %s40 = sphi 0, %s37
    %s41 = sphi 0, %s40
    %s57 = sphi 0, %s41
    %s61 = sphi 0, %s61
    %s63 = sphi 0, %s61
    %s64 = sphi 0, %s63
    %s78 = sphi 0, %s64
    %s82 = sphi 0, %s82
    %s84 = sphi 0, %s82
    %s85 = sphi 0, %s84
    %s99 = sphi 0, %s85
    %s103 = sphi 0, %s103
    %s105 = sphi 0, %s103
    %s106 = sphi 0, %s105
    %s120 = sphi 0, %s106
    %s124 = sphi 0, %s124
    %s126 = sphi 0, %s124
    %s127 = sphi 0, %s126
    %s141 = sphi 0, %s127
    %s145 = sphi 0, %s145
    %s147 = sphi 0, %s145
    %s148 = sphi 0, %s147
    %s162 = sphi 0, %s148
    %s166 = sphi 0, %s166
    %s168 = sphi 0, %s166
    %s169 = sphi 0, %s168
    %s183 = sphi 0, %s169
    %s187 = sphi 0, %s187
    %s189 = sphi 0, %s187
    %s190 = sphi 0, %s189
    %s204 = sphi 0, %s190
    %s208 = sphi 0, %s208
    %s210 = sphi 0, %s208
    %s211 = sphi 0, %s210
    %s225 = sphi 0, %s211
    %s229 = sphi 0, %s229
    %s231 = sphi 0, %s229
    %s232 = sphi 0, %s231
    %s246 = sphi 0, %s232
    %s250 = sphi 0, %s250
    %s252 = sphi 0, %s250
    %s253 = sphi 0, %s252
    %s267 = sphi 0, %s253
    %s271 = sphi 0, %s271
    %s273 = sphi 0, %s271
    %s274 = sphi 0, %s273
    %s288 = sphi 0, %s274
    %s292 = sphi 0, %s292
    %s294 = sphi 0, %s292
    %s295 = sphi 0, %s294
    %s309 = sphi 0, %s295
    %s313 = sphi 0, %s313
    %s315 = sphi 0, %s313
    %s316 = sphi 0, %s315
    %s330 = sphi 0, %s316
    %s334 = sphi 0, %s334
    %s336 = sphi 0, %s334
    %s337 = sphi 0, %s336
    %s351 = sphi 0, %s337
    %s355 = sphi 0, %s355
    %s357 = sphi 0, %s355
    %s358 = sphi 0, %s357
    %s372 = sphi 0, %s358
    %s376 = sphi 0, %s376
    %s378 = sphi 0, %s376
    %s379 = sphi 0, %s378
    %s393 = sphi 0, %s379
    %s397 = sphi 0, %s397
    %s399 = sphi 0, %s397
    %s400 = sphi 0, %s399
    %s414 = sphi 0, %s400
    %s418 = sphi 0, %s418
    %s420 = sphi 0, %s418
    %s421 = sphi 0, %s420
    %s435 = sphi 0, %s421
    %s439 = sphi 0, %s439
    %s441 = sphi 0, %s439
    %s442 = sphi 0, %s441
    %s456 = sphi 0, %s442
    %s460 = sphi 0, %s460
    %s462 = sphi 0, %s460
    %s463 = sphi 0, %s462
    %s477 = sphi 0, %s463
    %s483 = sphi 0, %s485
    %s486 = sphi 0, %s483
    %s487 = sphi 0, %s486
    %s503 = sphi 0, %s487
  $region4: #{_forward.1} parent=0 // loop_header_branch
    %30 = sbr.rel (%p28) target = $region8
  $region5: #{_forward.1} parent=0 // loop_body
    %s32 = ssub.s32 %s27, 1
    %s33 = ssub.s32 %s27, 2
    %s34 = sadd.s32 %s27, 1
    %s35 = ssub.s32 %s27, %s34
    %p36 = scmp.eq.s32.totalorder %s35, 0
    %s38 = sadd.s32 %s37, 1
    %s39 = scalar_select %p36, %s37, %s38
    %p42 = pneg %p36
    %p43 = scmp.eq.s32.totalorder %s27, 1
    %p44 = por %p42, %p43
    %p45 = scmp.ne.s32.totalorder %s37, %s40
    %p46 = scmp.eq.s32.totalorder %s27, 0
    %p47 = por %p45, %p46
    %p48 = scmp.ne.s32.totalorder %s37, %s40
    %p49 = scmp.eq.s32.totalorder %s32, 1
    %p50 = por %p48, %p49
    %p51 = scmp.ne.s32.totalorder %s40, %s41
    %p52 = scmp.eq.s32.totalorder %s32, 0
    %p53 = por %p51, %p52
    %p54 = scmp.ne.s32.totalorder %s40, %s41
    %p55 = scmp.eq.s32.totalorder %s33, 1
    %p56 = por %p54, %p55
    %p58 = scmp.ne.s32.totalorder %s41, %s57
    %p59 = scmp.eq.s32.totalorder %s33, 0
    %p60 = por %p58, %p59
    %s62 = sadd.s32 %s61, 1
    %p65 = scmp.eq.s32.totalorder %s27, 1
    %p66 = scmp.ne.s32.totalorder %s61, %s63
    %p67 = scmp.eq.s32.totalorder %s27, 0
    %p68 = por %p66, %p67
    %p69 = scmp.ne.s32.totalorder %s61, %s63
    %p70 = scmp.eq.s32.totalorder %s32, 1
    %p71 = por %p69, %p70
    %p72 = scmp.ne.s32.totalorder %s63, %s64
    %p73 = scmp.eq.s32.totalorder %s32, 0
    %p74 = por %p72, %p73
    %p75 = scmp.ne.s32.totalorder %s63, %s64
    %p76 = scmp.eq.s32.totalorder %s33, 1
    %p77 = por %p75, %p76
    %p79 = scmp.ne.s32.totalorder %s64, %s78
    %p80 = scmp.eq.s32.totalorder %s33, 0
    %p81 = por %p79, %p80
    %s83 = sadd.s32 %s82, 1
    %p86 = scmp.eq.s32.totalorder %s27, 1
    %p87 = scmp.ne.s32.totalorder %s82, %s84
    %p88 = scmp.eq.s32.totalorder %s27, 0
    %p89 = por %p87, %p88
    %p90 = scmp.ne.s32.totalorder %s82, %s84
    %p91 = scmp.eq.s32.totalorder %s32, 1
    %p92 = por %p90, %p91
    %p93 = scmp.ne.s32.totalorder %s84, %s85
    %p94 = scmp.eq.s32.totalorder %s32, 0
    %p95 = por %p93, %p94
    %p96 = scmp.ne.s32.totalorder %s84, %s85
    %p97 = scmp.eq.s32.totalorder %s33, 1
    %p98 = por %p96, %p97
    %p100 = scmp.ne.s32.totalorder %s85, %s99
    %p101 = scmp.eq.s32.totalorder %s33, 0
    %p102 = por %p100, %p101
    %s104 = sadd.s32 %s103, 1
    %p107 = scmp.eq.s32.totalorder %s27, 1
    %p108 = scmp.ne.s32.totalorder %s103, %s105
    %p109 = scmp.eq.s32.totalorder %s27, 0
    %p110 = por %p108, %p109
    %p111 = scmp.ne.s32.totalorder %s103, %s105
    %p112 = scmp.eq.s32.totalorder %s32, 1
    %p113 = por %p111, %p112
    %p114 = scmp.ne.s32.totalorder %s105, %s106
    %p115 = scmp.eq.s32.totalorder %s32, 0
    %p116 = por %p114, %p115
    %p117 = scmp.ne.s32.totalorder %s105, %s106
    %p118 = scmp.eq.s32.totalorder %s33, 1
    %p119 = por %p117, %p118
    %p121 = scmp.ne.s32.totalorder %s106, %s120
    %p122 = scmp.eq.s32.totalorder %s33, 0
    %p123 = por %p121, %p122
    %s125 = sadd.s32 %s124, 1
    %p128 = scmp.eq.s32.totalorder %s27, 1
    %p129 = scmp.ne.s32.totalorder %s124, %s126
    %p130 = scmp.eq.s32.totalorder %s27, 0
    %p131 = por %p129, %p130
    %p132 = scmp.ne.s32.totalorder %s124, %s126
    %p133 = scmp.eq.s32.totalorder %s32, 1
    %p134 = por %p132, %p133
    %p135 = scmp.ne.s32.totalorder %s126, %s127
    %p136 = scmp.eq.s32.totalorder %s32, 0
    %p137 = por %p135, %p136
    %p138 = scmp.ne.s32.totalorder %s126, %s127
    %p139 = scmp.eq.s32.totalorder %s33, 1
    %p140 = por %p138, %p139
    %p142 = scmp.ne.s32.totalorder %s127, %s141
    %p143 = scmp.eq.s32.totalorder %s33, 0
    %p144 = por %p142, %p143
    %s146 = sadd.s32 %s145, 1
    %p149 = scmp.eq.s32.totalorder %s27, 1
    %p150 = scmp.ne.s32.totalorder %s145, %s147
    %p151 = scmp.eq.s32.totalorder %s27, 0
    %p152 = por %p150, %p151
    %p153 = scmp.ne.s32.totalorder %s145, %s147
    %p154 = scmp.eq.s32.totalorder %s32, 1
    %p155 = por %p153, %p154
    %p156 = scmp.ne.s32.totalorder %s147, %s148
    %p157 = scmp.eq.s32.totalorder %s32, 0
    %p158 = por %p156, %p157
    %p159 = scmp.ne.s32.totalorder %s147, %s148
    %p160 = scmp.eq.s32.totalorder %s33, 1
    %p161 = por %p159, %p160
    %p163 = scmp.ne.s32.totalorder %s148, %s162
    %p164 = scmp.eq.s32.totalorder %s33, 0
    %p165 = por %p163, %p164
    %s167 = sadd.s32 %s166, 1
    %p170 = scmp.eq.s32.totalorder %s27, 1
    %p171 = scmp.ne.s32.totalorder %s166, %s168
    %p172 = scmp.eq.s32.totalorder %s27, 0
    %p173 = por %p171, %p172
    %p174 = scmp.ne.s32.totalorder %s166, %s168
    %p175 = scmp.eq.s32.totalorder %s32, 1
    %p176 = por %p174, %p175
    %p177 = scmp.ne.s32.totalorder %s168, %s169
    %p178 = scmp.eq.s32.totalorder %s32, 0
    %p179 = por %p177, %p178
    %p180 = scmp.ne.s32.totalorder %s168, %s169
    %p181 = scmp.eq.s32.totalorder %s33, 1
    %p182 = por %p180, %p181
    %p184 = scmp.ne.s32.totalorder %s169, %s183
    %p185 = scmp.eq.s32.totalorder %s33, 0
    %p186 = por %p184, %p185
    %s188 = sadd.s32 %s187, 1
    %p191 = scmp.eq.s32.totalorder %s27, 1
    %p192 = scmp.ne.s32.totalorder %s187, %s189
    %p193 = scmp.eq.s32.totalorder %s27, 0
    %p194 = por %p192, %p193
    %p195 = scmp.ne.s32.totalorder %s187, %s189
    %p196 = scmp.eq.s32.totalorder %s32, 1
    %p197 = por %p195, %p196
    %p198 = scmp.ne.s32.totalorder %s189, %s190
    %p199 = scmp.eq.s32.totalorder %s32, 0
    %p200 = por %p198, %p199
    %p201 = scmp.ne.s32.totalorder %s189, %s190
    %p202 = scmp.eq.s32.totalorder %s33, 1
    %p203 = por %p201, %p202
    %p205 = scmp.ne.s32.totalorder %s190, %s204
    %p206 = scmp.eq.s32.totalorder %s33, 0
    %p207 = por %p205, %p206
    %s209 = sadd.s32 %s208, 1
    %p212 = scmp.eq.s32.totalorder %s27, 1
    %p213 = scmp.ne.s32.totalorder %s208, %s210
    %p214 = scmp.eq.s32.totalorder %s27, 0
    %p215 = por %p213, %p214
    %p216 = scmp.ne.s32.totalorder %s208, %s210
    %p217 = scmp.eq.s32.totalorder %s32, 1
    %p218 = por %p216, %p217
    %p219 = scmp.ne.s32.totalorder %s210, %s211
    %p220 = scmp.eq.s32.totalorder %s32, 0
    %p221 = por %p219, %p220
    %p222 = scmp.ne.s32.totalorder %s210, %s211
    %p223 = scmp.eq.s32.totalorder %s33, 1
    %p224 = por %p222, %p223
    %p226 = scmp.ne.s32.totalorder %s211, %s225
    %p227 = scmp.eq.s32.totalorder %s33, 0
    %p228 = por %p226, %p227
    %s230 = sadd.s32 %s229, 1
    %p233 = scmp.eq.s32.totalorder %s27, 1
    %p234 = scmp.ne.s32.totalorder %s229, %s231
    %p235 = scmp.eq.s32.totalorder %s27, 0
    %p236 = por %p234, %p235
    %p237 = scmp.ne.s32.totalorder %s229, %s231
    %p238 = scmp.eq.s32.totalorder %s32, 1
    %p239 = por %p237, %p238
    %p240 = scmp.ne.s32.totalorder %s231, %s232
    %p241 = scmp.eq.s32.totalorder %s32, 0
    %p242 = por %p240, %p241
    %p243 = scmp.ne.s32.totalorder %s231, %s232
    %p244 = scmp.eq.s32.totalorder %s33, 1
    %p245 = por %p243, %p244
    %p247 = scmp.ne.s32.totalorder %s232, %s246
    %p248 = scmp.eq.s32.totalorder %s33, 0
    %p249 = por %p247, %p248
    %s251 = sadd.s32 %s250, 1
    %p254 = scmp.eq.s32.totalorder %s27, 1
    %p255 = scmp.ne.s32.totalorder %s250, %s252
    %p256 = scmp.eq.s32.totalorder %s27, 0
    %p257 = por %p255, %p256
    %p258 = scmp.ne.s32.totalorder %s250, %s252
    %p259 = scmp.eq.s32.totalorder %s32, 1
    %p260 = por %p258, %p259
    %p261 = scmp.ne.s32.totalorder %s252, %s253
    %p262 = scmp.eq.s32.totalorder %s32, 0
    %p263 = por %p261, %p262
    %p264 = scmp.ne.s32.totalorder %s252, %s253
    %p265 = scmp.eq.s32.totalorder %s33, 1
    %p266 = por %p264, %p265
    %p268 = scmp.ne.s32.totalorder %s253, %s267
    %p269 = scmp.eq.s32.totalorder %s33, 0
    %p270 = por %p268, %p269
    %s272 = sadd.s32 %s271, 1
    %p275 = scmp.eq.s32.totalorder %s27, 1
    %p276 = scmp.ne.s32.totalorder %s271, %s273
    %p277 = scmp.eq.s32.totalorder %s27, 0
    %p278 = por %p276, %p277
    %p279 = scmp.ne.s32.totalorder %s271, %s273
    %p280 = scmp.eq.s32.totalorder %s32, 1
    %p281 = por %p279, %p280
    %p282 = scmp.ne.s32.totalorder %s273, %s274
    %p283 = scmp.eq.s32.totalorder %s32, 0
    %p284 = por %p282, %p283
    %p285 = scmp.ne.s32.totalorder %s273, %s274
    %p286 = scmp.eq.s32.totalorder %s33, 1
    %p287 = por %p285, %p286
    %p289 = scmp.ne.s32.totalorder %s274, %s288
    %p290 = scmp.eq.s32.totalorder %s33, 0
    %p291 = por %p289, %p290
    %s293 = sadd.s32 %s292, 1
    %p296 = scmp.eq.s32.totalorder %s27, 1
    %p297 = scmp.ne.s32.totalorder %s292, %s294
    %p298 = scmp.eq.s32.totalorder %s27, 0
    %p299 = por %p297, %p298
    %p300 = scmp.ne.s32.totalorder %s292, %s294
    %p301 = scmp.eq.s32.totalorder %s32, 1
    %p302 = por %p300, %p301
    %p303 = scmp.ne.s32.totalorder %s294, %s295
    %p304 = scmp.eq.s32.totalorder %s32, 0
    %p305 = por %p303, %p304
    %p306 = scmp.ne.s32.totalorder %s294, %s295
    %p307 = scmp.eq.s32.totalorder %s33, 1
    %p308 = por %p306, %p307
    %p310 = scmp.ne.s32.totalorder %s295, %s309
    %p311 = scmp.eq.s32.totalorder %s33, 0
    %p312 = por %p310, %p311
    %s314 = sadd.s32 %s313, 1
    %p317 = scmp.eq.s32.totalorder %s27, 1
    %p318 = scmp.ne.s32.totalorder %s313, %s315
    %p319 = scmp.eq.s32.totalorder %s27, 0
    %p320 = por %p318, %p319
    %p321 = scmp.ne.s32.totalorder %s313, %s315
    %p322 = scmp.eq.s32.totalorder %s32, 1
    %p323 = por %p321, %p322
    %p324 = scmp.ne.s32.totalorder %s315, %s316
    %p325 = scmp.eq.s32.totalorder %s32, 0
    %p326 = por %p324, %p325
    %p327 = scmp.ne.s32.totalorder %s315, %s316
    %p328 = scmp.eq.s32.totalorder %s33, 1
    %p329 = por %p327, %p328
    %p331 = scmp.ne.s32.totalorder %s316, %s330
    %p332 = scmp.eq.s32.totalorder %s33, 0
    %p333 = por %p331, %p332
    %s335 = sadd.s32 %s334, 1
    %p338 = scmp.eq.s32.totalorder %s27, 1
    %p339 = scmp.ne.s32.totalorder %s334, %s336
    %p340 = scmp.eq.s32.totalorder %s27, 0
    %p341 = por %p339, %p340
    %p342 = scmp.ne.s32.totalorder %s334, %s336
    %p343 = scmp.eq.s32.totalorder %s32, 1
    %p344 = por %p342, %p343
    %p345 = scmp.ne.s32.totalorder %s336, %s337
    %p346 = scmp.eq.s32.totalorder %s32, 0
    %p347 = por %p345, %p346
    %p348 = scmp.ne.s32.totalorder %s336, %s337
    %p349 = scmp.eq.s32.totalorder %s33, 1
    %p350 = por %p348, %p349
    %p352 = scmp.ne.s32.totalorder %s337, %s351
    %p353 = scmp.eq.s32.totalorder %s33, 0
    %p354 = por %p352, %p353
    %s356 = sadd.s32 %s355, 1
    %p359 = scmp.eq.s32.totalorder %s27, 1
    %p360 = scmp.ne.s32.totalorder %s355, %s357
    %p361 = scmp.eq.s32.totalorder %s27, 0
    %p362 = por %p360, %p361
    %p363 = scmp.ne.s32.totalorder %s355, %s357
    %p364 = scmp.eq.s32.totalorder %s32, 1
    %p365 = por %p363, %p364
    %p366 = scmp.ne.s32.totalorder %s357, %s358
    %p367 = scmp.eq.s32.totalorder %s32, 0
    %p368 = por %p366, %p367
    %p369 = scmp.ne.s32.totalorder %s357, %s358
    %p370 = scmp.eq.s32.totalorder %s33, 1
    %p371 = por %p369, %p370
    %p373 = scmp.ne.s32.totalorder %s358, %s372
    %p374 = scmp.eq.s32.totalorder %s33, 0
    %p375 = por %p373, %p374
    %s377 = sadd.s32 %s376, 1
    %p380 = scmp.eq.s32.totalorder %s27, 1
    %p381 = scmp.ne.s32.totalorder %s376, %s378
    %p382 = scmp.eq.s32.totalorder %s27, 0
    %p383 = por %p381, %p382
    %p384 = scmp.ne.s32.totalorder %s376, %s378
    %p385 = scmp.eq.s32.totalorder %s32, 1
    %p386 = por %p384, %p385
    %p387 = scmp.ne.s32.totalorder %s378, %s379
    %p388 = scmp.eq.s32.totalorder %s32, 0
    %p389 = por %p387, %p388
    %p390 = scmp.ne.s32.totalorder %s378, %s379
    %p391 = scmp.eq.s32.totalorder %s33, 1
    %p392 = por %p390, %p391
    %p394 = scmp.ne.s32.totalorder %s379, %s393
    %p395 = scmp.eq.s32.totalorder %s33, 0
    %p396 = por %p394, %p395
    %s398 = sadd.s32 %s397, 1
    %p401 = scmp.eq.s32.totalorder %s27, 1
    %p402 = scmp.ne.s32.totalorder %s397, %s399
    %p403 = scmp.eq.s32.totalorder %s27, 0
    %p404 = por %p402, %p403
    %p405 = scmp.ne.s32.totalorder %s397, %s399
    %p406 = scmp.eq.s32.totalorder %s32, 1
    %p407 = por %p405, %p406
    %p408 = scmp.ne.s32.totalorder %s399, %s400
    %p409 = scmp.eq.s32.totalorder %s32, 0
    %p410 = por %p408, %p409
    %p411 = scmp.ne.s32.totalorder %s399, %s400
    %p412 = scmp.eq.s32.totalorder %s33, 1
    %p413 = por %p411, %p412
    %p415 = scmp.ne.s32.totalorder %s400, %s414
    %p416 = scmp.eq.s32.totalorder %s33, 0
    %p417 = por %p415, %p416
    %s419 = sadd.s32 %s418, 1
    %p422 = scmp.eq.s32.totalorder %s27, 1
    %p423 = scmp.ne.s32.totalorder %s418, %s420
    %p424 = scmp.eq.s32.totalorder %s27, 0
    %p425 = por %p423, %p424
    %p426 = scmp.ne.s32.totalorder %s418, %s420
    %p427 = scmp.eq.s32.totalorder %s32, 1
    %p428 = por %p426, %p427
    %p429 = scmp.ne.s32.totalorder %s420, %s421
    %p430 = scmp.eq.s32.totalorder %s32, 0
    %p431 = por %p429, %p430
    %p432 = scmp.ne.s32.totalorder %s420, %s421
    %p433 = scmp.eq.s32.totalorder %s33, 1
    %p434 = por %p432, %p433
    %p436 = scmp.ne.s32.totalorder %s421, %s435
    %p437 = scmp.eq.s32.totalorder %s33, 0
    %p438 = por %p436, %p437
    %s440 = sadd.s32 %s439, 1
    %p443 = scmp.eq.s32.totalorder %s27, 1
    %p444 = scmp.ne.s32.totalorder %s439, %s441
    %p445 = scmp.eq.s32.totalorder %s27, 0
    %p446 = por %p444, %p445
    %p447 = scmp.ne.s32.totalorder %s439, %s441
    %p448 = scmp.eq.s32.totalorder %s32, 1
    %p449 = por %p447, %p448
    %p450 = scmp.ne.s32.totalorder %s441, %s442
    %p451 = scmp.eq.s32.totalorder %s32, 0
    %p452 = por %p450, %p451
    %p453 = scmp.ne.s32.totalorder %s441, %s442
    %p454 = scmp.eq.s32.totalorder %s33, 1
    %p455 = por %p453, %p454
    %p457 = scmp.ne.s32.totalorder %s442, %s456
    %p458 = scmp.eq.s32.totalorder %s33, 0
    %p459 = por %p457, %p458
    %s461 = sadd.s32 %s460, 1
    %p464 = scmp.eq.s32.totalorder %s27, 1
    %p465 = scmp.ne.s32.totalorder %s460, %s462
    %p466 = scmp.eq.s32.totalorder %s27, 0
    %p467 = por %p465, %p466
    %p468 = scmp.ne.s32.totalorder %s460, %s462
    %p469 = scmp.eq.s32.totalorder %s32, 1
    %p470 = por %p468, %p469
    %p471 = scmp.ne.s32.totalorder %s462, %s463
    %p472 = scmp.eq.s32.totalorder %s32, 0
    %p473 = por %p471, %p472
    %p474 = scmp.ne.s32.totalorder %s462, %s463
    %p475 = scmp.eq.s32.totalorder %s33, 1
    %p476 = por %p474, %p475
    %p478 = scmp.ne.s32.totalorder %s463, %s477
    %p479 = scmp.eq.s32.totalorder %s33, 0
    %p480 = por %p478, %p479
    %s481 = ssub.s32 %s27, %s34
    %p482 = scmp.eq.s32.totalorder %s481, 0
    %s484 = sadd.s32 %s483, 1
    %s485 = scalar_select %p482, %s483, %s484
    %p488 = pneg %p482
    %p489 = scmp.eq.s32.totalorder %s27, 1
    %p490 = por %p488, %p489
    %p491 = scmp.ne.s32.totalorder %s483, %s486
    %p492 = scmp.eq.s32.totalorder %s27, 0
    %p493 = por %p491, %p492
    %p494 = scmp.ne.s32.totalorder %s483, %s486
    %p495 = scmp.eq.s32.totalorder %s32, 1
    %p496 = por %p494, %p495
    %p497 = scmp.ne.s32.totalorder %s486, %s487
    %p498 = scmp.eq.s32.totalorder %s32, 0
    %p499 = por %p497, %p498
    %p500 = scmp.ne.s32.totalorder %s486, %s487
    %p501 = scmp.eq.s32.totalorder %s33, 1
    %p502 = por %p500, %p501
    %p504 = scmp.ne.s32.totalorder %s487, %s503
    %p505 = scmp.eq.s32.totalorder %s33, 0
    %p506 = por %p504, %p505
    %p507 = scmp.le.s32.totalorder 1, %s27
    %p508 = scmp.lt.s32.totalorder %s27, 3
    %p509 = pnand %p507, %p508
    %p510 = pneg %p509
    // Predicated region
    $region9: #{_forward.1} parent=5 // pred_check
      _
    $region10: #{_forward.1} parent=5 // pred_check_branch
      %512 = sbr.rel (%p509) target = $region12
    $region11: #{_forward.1} parent=5 // pred_region
      %s513 = ssub.s32 %s27, 1
      // Predicated region
      $region13: #{_forward.1} parent=11 // pred_check
        %p514 = pneg %p74
      $region14: #{_forward.1} parent=11 // pred_check_branch
        %516 = sbr.rel (%p514) target = $region16
      $region15: #{_forward.1} parent=11 // pred_region
        _
      $region16: #{_forward.1} parent=11 // pred_fallthru
        _
      // Predicated region
      $region17: #{_forward.1} parent=11 // pred_check
        %p517 = pneg %p95
      $region18: #{_forward.1} parent=11 // pred_check_branch
        %519 = sbr.rel (%p517) target = $region20
      $region19: #{_forward.1} parent=11 // pred_region
        _
      $region20: #{_forward.1} parent=11 // pred_fallthru
        _
      // Predicated region
      $region21: #{_forward.1} parent=11 // pred_check
        %p520 = pneg %p116
      $region22: #{_forward.1} parent=11 // pred_check_branch
        %522 = sbr.rel (%p520) target = $region24
      $region23: #{_forward.1} parent=11 // pred_region
        _
      $region24: #{_forward.1} parent=11 // pred_fallthru
        _
      // Predicated region
      $region25: #{_forward.1} parent=11 // pred_check
        %p523 = pneg %p137
      $region26: #{_forward.1} parent=11 // pred_check_branch
        %525 = sbr.rel (%p523) target = $region28
      $region27: #{_forward.1} parent=11 // pred_region
        _
      $region28: #{_forward.1} parent=11 // pred_fallthru
        _
      // Predicated region
      $region29: #{_forward.1} parent=11 // pred_check
        %p526 = pneg %p158
      $region30: #{_forward.1} parent=11 // pred_check_branch
        %528 = sbr.rel (%p526) target = $region32
      $region31: #{_forward.1} parent=11 // pred_region
        _
      $region32: #{_forward.1} parent=11 // pred_fallthru
        _
      // Predicated region
      $region33: #{_forward.1} parent=11 // pred_check
        %p529 = pneg %p179
      $region34: #{_forward.1} parent=11 // pred_check_branch
        %531 = sbr.rel (%p529) target = $region36
      $region35: #{_forward.1} parent=11 // pred_region
        _
      $region36: #{_forward.1} parent=11 // pred_fallthru
        _
      // Predicated region
      $region37: #{_forward.1} parent=11 // pred_check
        %p532 = pneg %p200
      $region38: #{_forward.1} parent=11 // pred_check_branch
        %534 = sbr.rel (%p532) target = $region40
      $region39: #{_forward.1} parent=11 // pred_region
        _
      $region40: #{_forward.1} parent=11 // pred_fallthru
        _
      // Predicated region
      $region41: #{_forward.1} parent=11 // pred_check
        %p535 = pneg %p221
      $region42: #{_forward.1} parent=11 // pred_check_branch
        %537 = sbr.rel (%p535) target = $region44
      $region43: #{_forward.1} parent=11 // pred_region
        _
      $region44: #{_forward.1} parent=11 // pred_fallthru
        _
      // Predicated region
      $region45: #{_forward.1} parent=11 // pred_check
        %p538 = pneg %p242
      $region46: #{_forward.1} parent=11 // pred_check_branch
        %540 = sbr.rel (%p538) target = $region48
      $region47: #{_forward.1} parent=11 // pred_region
        _
      $region48: #{_forward.1} parent=11 // pred_fallthru
        _
      // Predicated region
      $region49: #{_forward.1} parent=11 // pred_check
        %p541 = pneg %p263
      $region50: #{_forward.1} parent=11 // pred_check_branch
        %543 = sbr.rel (%p541) target = $region52
      $region51: #{_forward.1} parent=11 // pred_region
        _
      $region52: #{_forward.1} parent=11 // pred_fallthru
        _
      // Predicated region
      $region53: #{_forward.1} parent=11 // pred_check
        %p544 = pneg %p284
      $region54: #{_forward.1} parent=11 // pred_check_branch
        %546 = sbr.rel (%p544) target = $region56
      $region55: #{_forward.1} parent=11 // pred_region
        _
      $region56: #{_forward.1} parent=11 // pred_fallthru
        _
      // Predicated region
      $region57: #{_forward.1} parent=11 // pred_check
        %p547 = pneg %p305
      $region58: #{_forward.1} parent=11 // pred_check_branch
        %549 = sbr.rel (%p547) target = $region60
      $region59: #{_forward.1} parent=11 // pred_region
        _
      $region60: #{_forward.1} parent=11 // pred_fallthru
        _
      // Predicated region
      $region61: #{_forward.1} parent=11 // pred_check
        %p550 = pneg %p326
      $region62: #{_forward.1} parent=11 // pred_check_branch
        %552 = sbr.rel (%p550) target = $region64
      $region63: #{_forward.1} parent=11 // pred_region
        _
      $region64: #{_forward.1} parent=11 // pred_fallthru
        _
      // Predicated region
      $region65: #{_forward.1} parent=11 // pred_check
        %p553 = pneg %p347
      $region66: #{_forward.1} parent=11 // pred_check_branch
        %555 = sbr.rel (%p553) target = $region68
      $region67: #{_forward.1} parent=11 // pred_region
        _
      $region68: #{_forward.1} parent=11 // pred_fallthru
        _
      // Predicated region
      $region69: #{_forward.1} parent=11 // pred_check
        %p556 = pneg %p368
      $region70: #{_forward.1} parent=11 // pred_check_branch
        %558 = sbr.rel (%p556) target = $region72
      $region71: #{_forward.1} parent=11 // pred_region
        _
      $region72: #{_forward.1} parent=11 // pred_fallthru
        _
      // Predicated region
      $region73: #{_forward.1} parent=11 // pred_check
        %p559 = pneg %p389
      $region74: #{_forward.1} parent=11 // pred_check_branch
        %561 = sbr.rel (%p559) target = $region76
      $region75: #{_forward.1} parent=11 // pred_region
        _
      $region76: #{_forward.1} parent=11 // pred_fallthru
        _
      // Predicated region
      $region77: #{_forward.1} parent=11 // pred_check
        %p562 = pneg %p410
      $region78: #{_forward.1} parent=11 // pred_check_branch
        %564 = sbr.rel (%p562) target = $region80
      $region79: #{_forward.1} parent=11 // pred_region
        _
      $region80: #{_forward.1} parent=11 // pred_fallthru
        _
      // Predicated region
      $region81: #{_forward.1} parent=11 // pred_check
        %p565 = pneg %p431
      $region82: #{_forward.1} parent=11 // pred_check_branch
        %567 = sbr.rel (%p565) target = $region84
      $region83: #{_forward.1} parent=11 // pred_region
        _
      $region84: #{_forward.1} parent=11 // pred_fallthru
        _
      // Predicated region
      $region85: #{_forward.1} parent=11 // pred_check
        %p568 = pneg %p452
      $region86: #{_forward.1} parent=11 // pred_check_branch
        %570 = sbr.rel (%p568) target = $region88
      $region87: #{_forward.1} parent=11 // pred_region
        _
      $region88: #{_forward.1} parent=11 // pred_fallthru
        _
      // Predicated region
      $region89: #{_forward.1} parent=11 // pred_check
        %p571 = pneg %p473
      $region90: #{_forward.1} parent=11 // pred_check_branch
        %573 = sbr.rel (%p571) target = $region92
      $region91: #{_forward.1} parent=11 // pred_region
        _
      $region92: #{_forward.1} parent=11 // pred_fallthru
        _
    $region12: #{_forward.1} parent=5 // pred_fallthru
      _
    %p574 = scmp.lt.s32.totalorder %s27, 2
    // Predicated region
    $region93: #{_forward.1} parent=5 // pred_check
      %p575 = pneg %p574
    $region94: #{_forward.1} parent=5 // pred_check_branch
      %577 = sbr.rel (%p575) target = $region96
    $region95: #{_forward.1} parent=5 // pred_region
      // Predicated region
      $region97: #{_forward.1} parent=95 // pred_check
        %p578 = pneg %p47
      $region98: #{_forward.1} parent=95 // pred_check_branch
        %580 = sbr.rel (%p578) target = $region100
      $region99: #{_forward.1} parent=95 // pred_region
        %p581 = scmp.lt.s32.totalorder %s27, 1
        %s582 = scalar_select %p581, %s27, 1
        %s583 = smul.addr %s582, 4
        %s584 = smul.addr %s583, 4
        %s585 = scalar_lea.vmem %s0, %s584
      $region100: #{_forward.1} parent=95 // pred_fallthru
        _
    $region96: #{_forward.1} parent=5 // pred_fallthru
      _
    %p586 = scmp.le.s32.totalorder 1, %s27
    %p587 = scmp.lt.s32.totalorder %s27, 3
    %p588 = pnand %p586, %p587
    %p589 = pneg %p588
    // Predicated region
    $region101: #{_forward.1} parent=5 // pred_check
      _
    $region102: #{_forward.1} parent=5 // pred_check_branch
      %591 = sbr.rel (%p588) target = $region104
    $region103: #{_forward.1} parent=5 // pred_region
      %s592 = ssub.s32 %s27, 1
      %p593 = scmp.lt.s32.totalorder %s32, 1
      %s594 = scalar_select %p593, %s32, 1
      %s595 = smul.addr %s594, 4
      %s596 = smul.addr %s595, 4
      %s597 = scalar_lea.vmem %s0, %s596
      %p598 = pneg %p53
      %p599 = pneg %p50
      %p600 = pneg %p74
      %p601 = pneg %p71
      %p602 = pneg %p95
      %p603 = pneg %p92
      %p604 = pneg %p116
      %p605 = pneg %p113
      %p606 = pneg %p137
      %p607 = pneg %p134
      %p608 = pneg %p158
      %p609 = pneg %p155
      %p610 = pneg %p179
      %p611 = pneg %p176
      %p612 = pneg %p200
      %p613 = pneg %p197
      %p614 = pneg %p221
      %p615 = pneg %p218
      %p616 = pneg %p242
      %p617 = pneg %p239
      %p618 = pneg %p263
      %p619 = pneg %p260
      %p620 = pneg %p284
      %p621 = pneg %p281
      %p622 = pneg %p305
      %p623 = pneg %p302
      %p624 = pneg %p326
      %p625 = pneg %p323
      %p626 = pneg %p347
      %p627 = pneg %p344
      %p628 = pneg %p368
      %p629 = pneg %p365
      %p630 = pneg %p389
      %p631 = pneg %p386
      %p632 = pneg %p410
      %p633 = pneg %p407
      %p634 = pneg %p431
      %p635 = pneg %p428
      %p636 = pneg %p452
      %p637 = pneg %p449
      %p638 = pneg %p473
      %p639 = pneg %p470
      %p640 = pneg %p499
      %p641 = pneg %p496
      %p642 = scmp.lt.s32.totalorder %s32, 1
      %s643 = scalar_select %p642, %s32, 1
      %s644 = smul.addr %s643, 8
      %s645 = scalar_lea.vmem %s21, %s644
      %p646 = scmp.lt.s32.totalorder %s32, 1
      %s647 = scalar_select %p646, %s32, 1
      %s648 = smul.addr %s647, 4
      %s649 = smul.addr %s648, 4
      %s650 = scalar_lea.vmem %s0, %s649
      %p651 = scmp.lt.s32.totalorder %s32, 1
      %s652 = scalar_select %p651, %s32, 1
      %s653 = smul.addr %s652, 8
      %s654 = scalar_lea.vmem %s21, %s653
      %v655 = vld [vmem:[%s1] sm:$0x1]
      %v656 = vld [vmem:[%s2] sm:$0x1]
      %v657 = vld [vmem:[%s650] sm:$0xf]
      %s658 = scalar_lea.vmem %s650, 4
      %v659 = vld [vmem:[%s658] sm:$0xf]
      %s660 = scalar_lea.vmem %s650, 8
      %v661 = vld [vmem:[%s660] sm:$0xf]
      %s662 = scalar_lea.vmem %s650, 12
      %v663 = vld [vmem:[%s662] sm:$0xf]
      %v664 = vld [vmem:[%s3] sm:$0xff]
      %vm665 = vcmask 31744
      %v667 = vsel %vm665, %v664, 0
      %vm669 = vcmask 1043456
      %v671 = vsel %vm669, %v657, 0
      %673 = vmatprep.subr.mxu0 0.0
      %674 = vmatpush1.msra.mxu0 0.0
      %675 = vmatprep.subr.mxu0 0.0
      %676 = vmatpush1.msra.mxu0 0.0
      %677 = vmatprep.subr.mxu0 0.0
      %678 = vmatpush1.msra.mxu0 0.0
      %679 = vmatprep.subr.mxu0 0.0
      %680 = vmatpush1.msra.mxu0 0.0
      %681 = vmatprep.subr.mxu0 0.0
      %682 = vmatpush1.msra.mxu0 0.0
      %683 = vmatprep.subr.mxu0 0.0
      %684 = vmatpush1.msra.mxu0 0.0
      %685 = vmatprep.subr.mxu0 0.0
      %686 = vmatpush1.msra.mxu0 0.0
      %687 = vmatprep.subr.mxu0 0.0
      %688 = vmatpush1.msra.mxu0 0.0
      %689 = vmatprep.subr.mxu0 0.0
      %690 = vmatpush1.msra.mxu0 0.0
      %691 = vmatprep.subr.mxu0 0.0
      %692 = vmatpush1.msra.mxu0 0.0
      %693 = vmatprep.subr.mxu0 0.0
      %694 = vmatpush1.msra.mxu0 0.0
      %695 = vmatprep.subr.mxu0 0.0
      %696 = vmatpush1.msra.mxu0 0.0
      %697 = vmatprep.subr.mxu0 0.0
      %698 = vmatpush1.msra.mxu0 0.0
      %699 = vmatprep.subr.mxu0 0.0
      %700 = vmatpush1.msra.mxu0 0.0
      %701 = vmatprep.subr.mxu0 0.0
      %702 = vmatpush1.msra.mxu0 0.0
      %703 = vmatprep.subr.mxu0 0.0
      %704 = vmatpush1.msra.mxu0 %v671
      %705 = vmatprep.subr.mxu0 0.0
      %706 = vmatpush2.msra.mxu0 0.0
      %707 = vmatprep.subr.mxu0 0.0
      %708 = vmatpush2.msra.mxu0 0.0
      %709 = vmatprep.subr.mxu0 0.0
      %710 = vmatpush2.msra.mxu0 0.0
      %711 = vmatprep.subr.mxu0 0.0
      %712 = vmatpush2.msra.mxu0 0.0
      %713 = vmatprep.subr.mxu0 0.0
      %714 = vmatpush2.msra.mxu0 0.0
      %715 = vmatprep.subr.mxu0 0.0
      %716 = vmatpush2.msra.mxu0 0.0
      %717 = vmatprep.subr.mxu0 0.0
      %718 = vmatpush2.msra.mxu0 0.0
      %719 = vmatprep.subr.mxu0 0.0
      %720 = vmatpush2.msra.mxu0 0.0
      %721 = vmatprep.subr.mxu0 0.0
      %722 = vmatpush2.msra.mxu0 0.0
      %723 = vmatprep.subr.mxu0 0.0
      %724 = vmatpush2.msra.mxu0 0.0
      %725 = vmatprep.subr.mxu0 0.0
      %726 = vmatpush2.msra.mxu0 0.0
      %727 = vmatprep.subr.mxu0 0.0
      %728 = vmatpush2.msra.mxu0 0.0
      %729 = vmatprep.subr.mxu0 0.0
      %730 = vmatpush2.msra.mxu0 0.0
      %731 = vmatprep.subr.mxu0 0.0
      %732 = vmatpush2.msra.mxu0 0.0
      %733 = vmatprep.subr.mxu0 0.0
      %734 = vmatpush2.msra.mxu0 0.0
      %735 = vmatprep.subr.mxu0 0.0
      %736 = vmatpush2.msra.mxu0 0.0
      %737 = vmatprep.mubr.f32.mxu0 0.0
      %738 = vmatmul.mubr.f32.gmra.mxu0 %v667
      %v739 = vpop.f32.mrf.mxu0
      %v740 = vadd.f32 0.0, %v739
      %v741 = vpop.f32.mrf.mxu0
      %742 = vdwg.mxu0
      %v744 = vsel %vm669, %v659, 0
      %746 = vmatprep.subr.mxu0 0.0
      %747 = vmatpush1.msra.mxu0 0.0
      %748 = vmatprep.subr.mxu0 0.0
      %749 = vmatpush1.msra.mxu0 0.0
      %750 = vmatprep.subr.mxu0 0.0
      %751 = vmatpush1.msra.mxu0 0.0
      %752 = vmatprep.subr.mxu0 0.0
      %753 = vmatpush1.msra.mxu0 0.0
      %754 = vmatprep.subr.mxu0 0.0
      %755 = vmatpush1.msra.mxu0 0.0
      %756 = vmatprep.subr.mxu0 0.0
      %757 = vmatpush1.msra.mxu0 0.0
      %758 = vmatprep.subr.mxu0 0.0
      %759 = vmatpush1.msra.mxu0 0.0
      %760 = vmatprep.subr.mxu0 0.0
      %761 = vmatpush1.msra.mxu0 0.0
      %762 = vmatprep.subr.mxu0 0.0
      %763 = vmatpush1.msra.mxu0 0.0
      %764 = vmatprep.subr.mxu0 0.0
      %765 = vmatpush1.msra.mxu0 0.0
      %766 = vmatprep.subr.mxu0 0.0
      %767 = vmatpush1.msra.mxu0 0.0
      %768 = vmatprep.subr.mxu0 0.0
      %769 = vmatpush1.msra.mxu0 0.0
      %770 = vmatprep.subr.mxu0 0.0
      %771 = vmatpush1.msra.mxu0 0.0
      %772 = vmatprep.subr.mxu0 0.0
      %773 = vmatpush1.msra.mxu0 0.0
      %774 = vmatprep.subr.mxu0 0.0
      %775 = vmatpush1.msra.mxu0 0.0
      %776 = vmatprep.subr.mxu0 0.0
      %777 = vmatpush1.msra.mxu0 %v744
      %778 = vmatprep.subr.mxu0 0.0
      %779 = vmatpush2.msra.mxu0 0.0
      %780 = vmatprep.subr.mxu0 0.0
      %781 = vmatpush2.msra.mxu0 0.0
      %782 = vmatprep.subr.mxu0 0.0
      %783 = vmatpush2.msra.mxu0 0.0
      %784 = vmatprep.subr.mxu0 0.0
      %785 = vmatpush2.msra.mxu0 0.0
      %786 = vmatprep.subr.mxu0 0.0
      %787 = vmatpush2.msra.mxu0 0.0
      %788 = vmatprep.subr.mxu0 0.0
      %789 = vmatpush2.msra.mxu0 0.0
      %790 = vmatprep.subr.mxu0 0.0
      %791 = vmatpush2.msra.mxu0 0.0
      %792 = vmatprep.subr.mxu0 0.0
      %793 = vmatpush2.msra.mxu0 0.0
      %794 = vmatprep.subr.mxu0 0.0
      %795 = vmatpush2.msra.mxu0 0.0
      %796 = vmatprep.subr.mxu0 0.0
      %797 = vmatpush2.msra.mxu0 0.0
      %798 = vmatprep.subr.mxu0 0.0
      %799 = vmatpush2.msra.mxu0 0.0
      %800 = vmatprep.subr.mxu0 0.0
      %801 = vmatpush2.msra.mxu0 0.0
      %802 = vmatprep.subr.mxu0 0.0
      %803 = vmatpush2.msra.mxu0 0.0
      %804 = vmatprep.subr.mxu0 0.0
      %805 = vmatpush2.msra.mxu0 0.0
      %806 = vmatprep.subr.mxu0 0.0
      %807 = vmatpush2.msra.mxu0 0.0
      %808 = vmatprep.subr.mxu0 0.0
      %809 = vmatpush2.msra.mxu0 0.0
      %810 = vmatprep.mubr.f32.mxu0 0.0
      %811 = vmatmul.mubr.f32.gmra.mxu0 %v667
      %v812 = vpop.f32.mrf.mxu0
      %v813 = vadd.f32 0.0, %v812
      %v814 = vpop.f32.mrf.mxu0
      %815 = vdwg.mxu0
      %v817 = vsel %vm669, %v661, 0
      %819 = vmatprep.subr.mxu0 0.0
      %820 = vmatpush1.msra.mxu0 0.0
      %821 = vmatprep.subr.mxu0 0.0
      %822 = vmatpush1.msra.mxu0 0.0
      %823 = vmatprep.subr.mxu0 0.0
      %824 = vmatpush1.msra.mxu0 0.0
      %825 = vmatprep.subr.mxu0 0.0
      %826 = vmatpush1.msra.mxu0 0.0
      %827 = vmatprep.subr.mxu0 0.0
      %828 = vmatpush1.msra.mxu0 0.0
      %829 = vmatprep.subr.mxu0 0.0
      %830 = vmatpush1.msra.mxu0 0.0
      %831 = vmatprep.subr.mxu0 0.0
      %832 = vmatpush1.msra.mxu0 0.0
      %833 = vmatprep.subr.mxu0 0.0
      %834 = vmatpush1.msra.mxu0 0.0
      %835 = vmatprep.subr.mxu0 0.0
      %836 = vmatpush1.msra.mxu0 0.0
      %837 = vmatprep.subr.mxu0 0.0
      %838 = vmatpush1.msra.mxu0 0.0
      %839 = vmatprep.subr.mxu0 0.0
      %840 = vmatpush1.msra.mxu0 0.0
      %841 = vmatprep.subr.mxu0 0.0
      %842 = vmatpush1.msra.mxu0 0.0
      %843 = vmatprep.subr.mxu0 0.0
      %844 = vmatpush1.msra.mxu0 0.0
      %845 = vmatprep.subr.mxu0 0.0
      %846 = vmatpush1.msra.mxu0 0.0
      %847 = vmatprep.subr.mxu0 0.0
      %848 = vmatpush1.msra.mxu0 0.0
      %849 = vmatprep.subr.mxu0 0.0
      %850 = vmatpush1.msra.mxu0 %v817
      %851 = vmatprep.subr.mxu0 0.0
      %852 = vmatpush2.msra.mxu0 0.0
      %853 = vmatprep.subr.mxu0 0.0
      %854 = vmatpush2.msra.mxu0 0.0
      %855 = vmatprep.subr.mxu0 0.0
      %856 = vmatpush2.msra.mxu0 0.0
      %857 = vmatprep.subr.mxu0 0.0
      %858 = vmatpush2.msra.mxu0 0.0
      %859 = vmatprep.subr.mxu0 0.0
      %860 = vmatpush2.msra.mxu0 0.0
      %861 = vmatprep.subr.mxu0 0.0
      %862 = vmatpush2.msra.mxu0 0.0
      %863 = vmatprep.subr.mxu0 0.0
      %864 = vmatpush2.msra.mxu0 0.0
      %865 = vmatprep.subr.mxu0 0.0
      %866 = vmatpush2.msra.mxu0 0.0
      %867 = vmatprep.subr.mxu0 0.0
      %868 = vmatpush2.msra.mxu0 0.0
      %869 = vmatprep.subr.mxu0 0.0
      %870 = vmatpush2.msra.mxu0 0.0
      %871 = vmatprep.subr.mxu0 0.0
      %872 = vmatpush2.msra.mxu0 0.0
      %873 = vmatprep.subr.mxu0 0.0
      %874 = vmatpush2.msra.mxu0 0.0
      %875 = vmatprep.subr.mxu0 0.0
      %876 = vmatpush2.msra.mxu0 0.0
      %877 = vmatprep.subr.mxu0 0.0
      %878 = vmatpush2.msra.mxu0 0.0
      %879 = vmatprep.subr.mxu0 0.0
      %880 = vmatpush2.msra.mxu0 0.0
      %881 = vmatprep.subr.mxu0 0.0
      %882 = vmatpush2.msra.mxu0 0.0
      %883 = vmatprep.mubr.f32.mxu0 0.0
      %884 = vmatmul.mubr.f32.gmra.mxu0 %v667
      %v885 = vpop.f32.mrf.mxu0
      %v886 = vadd.f32 0.0, %v885
      %v887 = vpop.f32.mrf.mxu0
      %888 = vdwg.mxu0
      %v890 = vsel %vm669, %v663, 0
      %892 = vmatprep.subr.mxu0 0.0
      %893 = vmatpush1.msra.mxu0 0.0
      %894 = vmatprep.subr.mxu0 0.0
      %895 = vmatpush1.msra.mxu0 0.0
      %896 = vmatprep.subr.mxu0 0.0
      %897 = vmatpush1.msra.mxu0 0.0
      %898 = vmatprep.subr.mxu0 0.0
      %899 = vmatpush1.msra.mxu0 0.0
      %900 = vmatprep.subr.mxu0 0.0
      %901 = vmatpush1.msra.mxu0 0.0
      %902 = vmatprep.subr.mxu0 0.0
      %903 = vmatpush1.msra.mxu0 0.0
      %904 = vmatprep.subr.mxu0 0.0
      %905 = vmatpush1.msra.mxu0 0.0
      %906 = vmatprep.subr.mxu0 0.0
      %907 = vmatpush1.msra.mxu0 0.0
      %908 = vmatprep.subr.mxu0 0.0
      %909 = vmatpush1.msra.mxu0 0.0
      %910 = vmatprep.subr.mxu0 0.0
      %911 = vmatpush1.msra.mxu0 0.0
      %912 = vmatprep.subr.mxu0 0.0
      %913 = vmatpush1.msra.mxu0 0.0
      %914 = vmatprep.subr.mxu0 0.0
      %915 = vmatpush1.msra.mxu0 0.0
      %916 = vmatprep.subr.mxu0 0.0
      %917 = vmatpush1.msra.mxu0 0.0
      %918 = vmatprep.subr.mxu0 0.0
      %919 = vmatpush1.msra.mxu0 0.0
      %920 = vmatprep.subr.mxu0 0.0
      %921 = vmatpush1.msra.mxu0 0.0
      %922 = vmatprep.subr.mxu0 0.0
      %923 = vmatpush1.msra.mxu0 %v890
      %924 = vmatprep.subr.mxu0 0.0
      %925 = vmatpush2.msra.mxu0 0.0
      %926 = vmatprep.subr.mxu0 0.0
      %927 = vmatpush2.msra.mxu0 0.0
      %928 = vmatprep.subr.mxu0 0.0
      %929 = vmatpush2.msra.mxu0 0.0
      %930 = vmatprep.subr.mxu0 0.0
      %931 = vmatpush2.msra.mxu0 0.0
      %932 = vmatprep.subr.mxu0 0.0
      %933 = vmatpush2.msra.mxu0 0.0
      %934 = vmatprep.subr.mxu0 0.0
      %935 = vmatpush2.msra.mxu0 0.0
      %936 = vmatprep.subr.mxu0 0.0
      %937 = vmatpush2.msra.mxu0 0.0
      %938 = vmatprep.subr.mxu0 0.0
      %939 = vmatpush2.msra.mxu0 0.0
      %940 = vmatprep.subr.mxu0 0.0
      %941 = vmatpush2.msra.mxu0 0.0
      %942 = vmatprep.subr.mxu0 0.0
      %943 = vmatpush2.msra.mxu0 0.0
      %944 = vmatprep.subr.mxu0 0.0
      %945 = vmatpush2.msra.mxu0 0.0
      %946 = vmatprep.subr.mxu0 0.0
      %947 = vmatpush2.msra.mxu0 0.0
      %948 = vmatprep.subr.mxu0 0.0
      %949 = vmatpush2.msra.mxu0 0.0
      %950 = vmatprep.subr.mxu0 0.0
      %951 = vmatpush2.msra.mxu0 0.0
      %952 = vmatprep.subr.mxu0 0.0
      %953 = vmatpush2.msra.mxu0 0.0
      %954 = vmatprep.subr.mxu0 0.0
      %955 = vmatpush2.msra.mxu0 0.0
      %956 = vmatprep.mubr.f32.mxu0 0.0
      %957 = vmatmul.mubr.f32.gmra.mxu0 %v667
      %v958 = vpop.f32.mrf.mxu0
      %v959 = vadd.f32 0.0, %v958
      %v960 = vpop.f32.mrf.mxu0
      %961 = vdwg.mxu0
      %v962 = vld [vmem:[%s4] sm:$0xff]
      %v963 = vld [vmem:[%s5] sm:$0xff]
      %vm964 = vcmask 523264
      %v965 = vsel %vm964, %v740, 0.0
      %966 = vadd.xlane.f32.xlu0 %v965
      %v967 = vpop.xlane.xlu0 %966
      %v968 = vmul.f32 %v740, %v740
      %v969 = vsel %vm964, %v968, 0.0
      %970 = vadd.xlane.f32.xlu0 %v969
      %v971 = vpop.xlane.xlu0 %970
      %v972 = vsel %vm964, %v813, 0.0
      %973 = vadd.xlane.f32.xlu0 %v972
      %v974 = vpop.xlane.xlu0 %973
      %v975 = vadd.f32 %v967, %v974
      %v976 = vmul.f32 %v813, %v813
      %v977 = vsel %vm964, %v976, 0.0
      %978 = vadd.xlane.f32.xlu0 %v977
      %v979 = vpop.xlane.xlu0 %978
      %v980 = vadd.f32 %v971, %v979
      %v981 = vsel %vm964, %v886, 0.0
      %982 = vadd.xlane.f32.xlu0 %v981
      %v983 = vpop.xlane.xlu0 %982
      %v984 = vadd.f32 %v975, %v983
      %v985 = vmul.f32 %v886, %v886
      %v986 = vsel %vm964, %v985, 0.0
      %987 = vadd.xlane.f32.xlu0 %v986
      %v988 = vpop.xlane.xlu0 %987
      %v989 = vadd.f32 %v980, %v988
      %v990 = vsel %vm964, %v959, 0.0
      %991 = vadd.xlane.f32.xlu0 %v990
      %v992 = vpop.xlane.xlu0 %991
      %v993 = vadd.f32 %v984, %v992
      %v994 = vmul.f32 %v959, %v959
      %v995 = vsel %vm964, %v994, 0.0
      %996 = vadd.xlane.f32.xlu0 %v995
      %v997 = vpop.xlane.xlu0 %996
      %v998 = vadd.f32 %v989, %v997
      %v999 = vmul.f32 %v993, 0.00390625
      %v1000 = vmul.f32 %v998, 0.00390625
      %v1001 = vmul.f32 %v999, %v999
      %v1002 = vsub.f32 %v1000, %v1001
      %v1003 = vmax.f32 %v1002, 0.0
      %v1004 = vadd.f32 %v1003, 1e-05
      %v1005 = vrsqrt.pop %v1004
      %v1006 = vmul.f32 %v962, %v1005
      %v1007 = vmul.f32 %v999, %v1006
      %v1008 = vsub.f32 %v963, %v1007
      %1010 = vset.pattern.permute.xlu0 0
      %1011 = vperm.xlu0 %1010, %v1006
      %v1012 = vpop.permute.xlu0 %1011
      %v1014 = vmul.f32 %v740, %v1012
      %1016 = vset.pattern.permute.xlu0 0
      %1017 = vperm.xlu0 %1016, %v1008
      %v1018 = vpop.permute.xlu0 %1017
      %v1020 = vadd.f32 %v1014, %v1018
      %v1021 = vmul.f32 %v813, %v1012
      %v1022 = vadd.f32 %v1021, %v1018
      %v1023 = vmul.f32 %v886, %v1012
      %v1024 = vadd.f32 %v1023, %v1018
      %v1025 = vmul.f32 %v959, %v1012
      %v1026 = vadd.f32 %v1025, %v1018
      %v1027 = vmax.f32 %v1020, 0.0
      %v1028 = vmin.f32 %v1027, 6.0
      %v1029 = vmax.f32 %v1022, 0.0
      %v1030 = vmin.f32 %v1029, 6.0
      %v1031 = vmax.f32 %v1024, 0.0
      %v1032 = vmin.f32 %v1031, 6.0
      %v1033 = vmax.f32 %v1026, 0.0
      %v1034 = vmin.f32 %v1033, 6.0
      %v1035 = vld [vmem:[%s6] sm:$0xff]
      %v1036 = vld [vmem:[%s6 + $0x8] sm:$0xff]
      %v1037 = vld [vmem:[%s6 + $0x10] sm:$0xff]
      %v1038 = vld [vmem:[%s6 + $0x18] sm:$0xff]
      %v1039 = vld [vmem:[%s6 + $0x20] sm:$0xff]
      %v1040 = vld [vmem:[%s6 + $0x28] sm:$0xff]
      %v1041 = vld [vmem:[%s6 + $0x30] sm:$0xff]
      %v1042 = vld [vmem:[%s6 + $0x38] sm:$0xff]
      %v1043 = vld [vmem:[%s6 + $0x40] sm:$0xff]
      %1045 = vrot.lane.b32.xlu0 %v1034, 9
      %v1046 = vpop.permute.xlu0 %1045
      %vm1048 = vcmask 72704
      %v1049 = vsel %vm1048, 0.0, %v1046
      %vm1050 = vcmp.ge.f32.partialorder %v655, 1.0
      %v1051 = vsel %vm1050, 1.0, 0.0
      %vm1052 = vcmp.ge.f32.partialorder %v656, 1.0
      %v1053 = vsel %vm1052, 1.0, 0.0
      %v1054 = vmul.f32 %v1051, %v1053
      %v1056 = vlaneseq
      %v1057 = vshrl.u32 %v1056, 7
      %v1058 = vsub.s32 0, %v1057
      %v1059 = vrot.slane %v1054, %v1058
      %v1061 = vmul.f32 %v1049, %v1059
      %1063 = vset.pattern.permute.xlu0 0
      %1064 = vperm.xlu0 %1063, %v1035
      %v1065 = vpop.permute.xlu0 %1064
      %v1067 = vmul.f32 %v1061, %v1065
      %1069 = vrot.lane.b32.xlu0 %v1032, 8
      %v1070 = vpop.permute.xlu0 %1069
      %vm1072 = vcmask 64512
      %v1073 = vsel %vm1072, 0.0, %v1070
      %v1075 = vlaneseq
      %v1076 = vshrl.u32 %v1075, 7
      %v1077 = vsub.s32 0, %v1076
      %v1078 = vrot.slane %v1051, %v1077
      %v1080 = vmul.f32 %v1073, %v1078
      %1082 = vset.pattern.permute.xlu0 0
      %1083 = vperm.xlu0 %1082, %v1036
      %v1084 = vpop.permute.xlu0 %1083
      %v1086 = vmul.f32 %v1080, %v1084
      %v1087 = vadd.f32 %v1067, %v1086
      %1088 = vrot.lane.b32.xlu0 %v1034, 8
      %v1089 = vpop.permute.xlu0 %1088
      %v1091 = vsel %vm1072, 0.0, %v1089
      %v1092 = vmul.f32 %v1091, %v1078
      %1094 = vset.pattern.permute.xlu0 0
      %1095 = vperm.xlu0 %1094, %v1037
      %v1096 = vpop.permute.xlu0 %1095
      %v1098 = vmul.f32 %v1092, %v1096
      %v1099 = vadd.f32 %v1087, %v1098
      %1101 = vrot.lane.b32.xlu0 %v1030, 1
      %v1102 = vpop.permute.xlu0 %1101
      %vm1104 = vcmask 7168
      %v1105 = vsel %vm1104, 0.0, %v1102
      %v1107 = vlaneseq
      %v1108 = vshrl.u32 %v1107, 7
      %v1109 = vsub.s32 0, %v1108
      %v1110 = vrot.slane %v1053, %v1109
      %v1112 = vmul.f32 %v1105, %v1110
      %1114 = vset.pattern.permute.xlu0 0
      %1115 = vperm.xlu0 %1114, %v1038
      %v1116 = vpop.permute.xlu0 %1115
      %v1118 = vmul.f32 %v1112, %v1116
      %v1119 = vadd.f32 %v1099, %v1118
      %1121 = vset.pattern.permute.xlu0 0
      %1122 = vperm.xlu0 %1121, %v1039
      %v1123 = vpop.permute.xlu0 %1122
      %v1125 = vmul.f32 %v1028, %v1123
      %v1126 = vadd.f32 %v1119, %v1125
      %1128 = vset.pattern.permute.xlu0 0
      %1129 = vperm.xlu0 %1128, %v1040
      %v1130 = vpop.permute.xlu0 %1129
      %v1132 = vmul.f32 %v1030, %v1130
      %v1133 = vadd.f32 %v1126, %v1132
      %1134 = vrot.lane.b32.xlu0 %v1034, 1
      %v1135 = vpop.permute.xlu0 %1134
      %v1137 = vsel %vm1104, 0.0, %v1135
      %v1138 = vmul.f32 %v1137, %v1110
      %1140 = vset.pattern.permute.xlu0 0
      %1141 = vperm.xlu0 %1140, %v1041
      %v1142 = vpop.permute.xlu0 %1141
      %v1144 = vmul.f32 %v1138, %v1142
      %v1145 = vadd.f32 %v1133, %v1144
      %1147 = vset.pattern.permute.xlu0 0
      %1148 = vperm.xlu0 %1147, %v1042
      %v1149 = vpop.permute.xlu0 %1148
      %v1151 = vmul.f32 %v1032, %v1149
      %v1152 = vadd.f32 %v1145, %v1151
      %1154 = vset.pattern.permute.xlu0 0
      %1155 = vperm.xlu0 %1154, %v1043
      %v1156 = vpop.permute.xlu0 %1155
      %v1158 = vmul.f32 %v1034, %v1156
      %v1159 = vadd.f32 %v1152, %v1158
      %v1160 = vld [vmem:[%s7] sm:$0xff]
      %v1161 = vld [vmem:[%s8] sm:$0xff]
      %v1162 = vsel %vm964, %v1159, 0.0
      %1163 = vadd.xlane.f32.xlu0 %v1162
      %v1164 = vpop.xlane.xlu0 %1163
      %v1165 = vmul.f32 %v1159, %v1159
      %v1166 = vsel %vm964, %v1165, 0.0
      %1167 = vadd.xlane.f32.xlu0 %v1166
      %v1168 = vpop.xlane.xlu0 %1167
      %v1169 = vmul.f32 %v1164, 0.015625
      %v1170 = vmul.f32 %v1168, 0.015625
      %v1171 = vmul.f32 %v1169, %v1169
      %v1172 = vsub.f32 %v1170, %v1171
      %v1173 = vmax.f32 %v1172, 0.0
      %v1174 = vadd.f32 %v1173, 1e-05
      %v1175 = vrsqrt.pop %v1174
      %v1176 = vmul.f32 %v1160, %v1175
      %v1177 = vmul.f32 %v1169, %v1176
      %v1178 = vsub.f32 %v1161, %v1177
      %1180 = vset.pattern.permute.xlu0 0
      %1181 = vperm.xlu0 %1180, %v1176
      %v1182 = vpop.permute.xlu0 %1181
      %v1184 = vmul.f32 %v1159, %v1182
      %1186 = vset.pattern.permute.xlu0 0
      %1187 = vperm.xlu0 %1186, %v1178
      %v1188 = vpop.permute.xlu0 %1187
      %v1190 = vadd.f32 %v1184, %v1188
      %v1191 = vmax.f32 %v1190, 0.0
      %v1192 = vmin.f32 %v1191, 6.0
      %v1193 = vld [vmem:[%s9] sm:$0xff]
      %v1195 = vsel %vm1072, %v1193, 0
      %1197 = vmatprep.subr.mxu0 0.0
      %1198 = vmatpush1.msra.mxu0 0.0
      %1199 = vmatprep.subr.mxu0 0.0
      %1200 = vmatpush1.msra.mxu0 0.0
      %1201 = vmatprep.subr.mxu0 0.0
      %1202 = vmatpush1.msra.mxu0 0.0
      %1203 = vmatprep.subr.mxu0 0.0
      %1204 = vmatpush1.msra.mxu0 0.0
      %1205 = vmatprep.subr.mxu0 0.0
      %1206 = vmatpush1.msra.mxu0 0.0
      %1207 = vmatprep.subr.mxu0 0.0
      %1208 = vmatpush1.msra.mxu0 0.0
      %1209 = vmatprep.subr.mxu0 0.0
      %1210 = vmatpush1.msra.mxu0 0.0
      %1211 = vmatprep.subr.mxu0 0.0
      %1212 = vmatpush1.msra.mxu0 0.0
      %1213 = vmatprep.subr.mxu0 0.0
      %1214 = vmatpush1.msra.mxu0 0.0
      %1215 = vmatprep.subr.mxu0 0.0
      %1216 = vmatpush1.msra.mxu0 0.0
      %1217 = vmatprep.subr.mxu0 0.0
      %1218 = vmatpush1.msra.mxu0 0.0
      %1219 = vmatprep.subr.mxu0 0.0
      %1220 = vmatpush1.msra.mxu0 0.0
      %1221 = vmatprep.subr.mxu0 0.0
      %1222 = vmatpush1.msra.mxu0 0.0
      %1223 = vmatprep.subr.mxu0 0.0
      %1224 = vmatpush1.msra.mxu0 0.0
      %1225 = vmatprep.subr.mxu0 0.0
      %1226 = vmatpush1.msra.mxu0 0.0
      %1227 = vmatprep.subr.mxu0 0.0
      %1228 = vmatpush1.msra.mxu0 %v1192
      %1229 = vmatprep.subr.mxu0 0.0
      %1230 = vmatpush2.msra.mxu0 0.0
      %1231 = vmatprep.subr.mxu0 0.0
      %1232 = vmatpush2.msra.mxu0 0.0
      %1233 = vmatprep.subr.mxu0 0.0
      %1234 = vmatpush2.msra.mxu0 0.0
      %1235 = vmatprep.subr.mxu0 0.0
      %1236 = vmatpush2.msra.mxu0 0.0
      %1237 = vmatprep.subr.mxu0 0.0
      %1238 = vmatpush2.msra.mxu0 0.0
      %1239 = vmatprep.subr.mxu0 0.0
      %1240 = vmatpush2.msra.mxu0 0.0
      %1241 = vmatprep.subr.mxu0 0.0
      %1242 = vmatpush2.msra.mxu0 0.0
      %1243 = vmatprep.subr.mxu0 0.0
      %1244 = vmatpush2.msra.mxu0 0.0
      %1245 = vmatprep.subr.mxu0 0.0
      %1246 = vmatpush2.msra.mxu0 0.0
      %1247 = vmatprep.subr.mxu0 0.0
      %1248 = vmatpush2.msra.mxu0 0.0
      %1249 = vmatprep.subr.mxu0 0.0
      %1250 = vmatpush2.msra.mxu0 0.0
      %1251 = vmatprep.subr.mxu0 0.0
      %1252 = vmatpush2.msra.mxu0 0.0
      %1253 = vmatprep.subr.mxu0 0.0
      %1254 = vmatpush2.msra.mxu0 0.0
      %1255 = vmatprep.subr.mxu0 0.0
      %1256 = vmatpush2.msra.mxu0 0.0
      %1257 = vmatprep.subr.mxu0 0.0
      %1258 = vmatpush2.msra.mxu0 0.0
      %1259 = vmatprep.subr.mxu0 0.0
      %1260 = vmatpush2.msra.mxu0 0.0
      %1261 = vmatprep.mubr.f32.mxu0 0.0
      %1262 = vmatmul.mubr.f32.gmra.mxu0 %v1195
      %v1263 = vpop.f32.mrf.mxu0
      %v1264 = vadd.f32 0.0, %v1263
      %v1265 = vpop.f32.mrf.mxu0
      %1266 = vdwg.mxu0
      %v1267 = vld [vmem:[%s10] sm:$0xff]
      %v1268 = vld [vmem:[%s11] sm:$0xff]
      %v1269 = vsel %vm964, %v1264, 0.0
      %1270 = vadd.xlane.f32.xlu0 %v1269
      %v1271 = vpop.xlane.xlu0 %1270
      %v1272 = vmul.f32 %v1264, %v1264
      %v1273 = vsel %vm964, %v1272, 0.0
      %1274 = vadd.xlane.f32.xlu0 %v1273
      %v1275 = vpop.xlane.xlu0 %1274
      %v1276 = vmul.f32 %v1271, 0.015625
      %v1277 = vmul.f32 %v1275, 0.015625
      %v1278 = vmul.f32 %v1276, %v1276
      %v1279 = vsub.f32 %v1277, %v1278
      %v1280 = vmax.f32 %v1279, 0.0
      %v1281 = vadd.f32 %v1280, 1e-05
      %v1282 = vrsqrt.pop %v1281
      %v1283 = vmul.f32 %v1267, %v1282
      %v1284 = vmul.f32 %v1276, %v1283
      %v1285 = vsub.f32 %v1268, %v1284
      %1287 = vset.pattern.permute.xlu0 0
      %1288 = vperm.xlu0 %1287, %v1283
      %v1289 = vpop.permute.xlu0 %1288
      %v1291 = vmul.f32 %v1264, %v1289
      %1293 = vset.pattern.permute.xlu0 0
      %1294 = vperm.xlu0 %1293, %v1285
      %v1295 = vpop.permute.xlu0 %1294
      %v1297 = vadd.f32 %v1291, %v1295
      %v1298 = vld [vmem:[%s12] sm:$0xff]
      %v1299 = vld [vmem:[%s12 + $0x8] sm:$0xff]
      %v1301 = vsel %vm1072, %v1298, 0
      %v1304 = vsel %vm1072, %v1299, 0
      %1306 = vmatprep.subr.mxu0 0.0
      %1307 = vmatpush1.msra.mxu0 0.0
      %1308 = vmatprep.subr.mxu0 0.0
      %1309 = vmatpush1.msra.mxu0 0.0
      %1310 = vmatprep.subr.mxu0 0.0
      %1311 = vmatpush1.msra.mxu0 0.0
      %1312 = vmatprep.subr.mxu0 0.0
      %1313 = vmatpush1.msra.mxu0 0.0
      %1314 = vmatprep.subr.mxu0 0.0
      %1315 = vmatpush1.msra.mxu0 0.0
      %1316 = vmatprep.subr.mxu0 0.0
      %1317 = vmatpush1.msra.mxu0 0.0
      %1318 = vmatprep.subr.mxu0 0.0
      %1319 = vmatpush1.msra.mxu0 0.0
      %1320 = vmatprep.subr.mxu0 0.0
      %1321 = vmatpush1.msra.mxu0 0.0
      %1322 = vmatprep.subr.mxu0 0.0
      %1323 = vmatpush1.msra.mxu0 0.0
      %1324 = vmatprep.subr.mxu0 0.0
      %1325 = vmatpush1.msra.mxu0 0.0
      %1326 = vmatprep.subr.mxu0 0.0
      %1327 = vmatpush1.msra.mxu0 0.0
      %1328 = vmatprep.subr.mxu0 0.0
      %1329 = vmatpush1.msra.mxu0 0.0
      %1330 = vmatprep.subr.mxu0 0.0
      %1331 = vmatpush1.msra.mxu0 0.0
      %1332 = vmatprep.subr.mxu0 0.0
      %1333 = vmatpush1.msra.mxu0 0.0
      %1334 = vmatprep.subr.mxu0 0.0
      %1335 = vmatpush1.msra.mxu0 0.0
      %1336 = vmatprep.subr.mxu0 0.0
      %1337 = vmatpush1.msra.mxu0 %v1297
      %1338 = vmatprep.subr.mxu0 0.0
      %1339 = vmatpush2.msra.mxu0 0.0
      %1340 = vmatprep.subr.mxu0 0.0
      %1341 = vmatpush2.msra.mxu0 0.0
      %1342 = vmatprep.subr.mxu0 0.0
      %1343 = vmatpush2.msra.mxu0 0.0
      %1344 = vmatprep.subr.mxu0 0.0
      %1345 = vmatpush2.msra.mxu0 0.0
      %1346 = vmatprep.subr.mxu0 0.0
      %1347 = vmatpush2.msra.mxu0 0.0
      %1348 = vmatprep.subr.mxu0 0.0
      %1349 = vmatpush2.msra.mxu0 0.0
      %1350 = vmatprep.subr.mxu0 0.0
      %1351 = vmatpush2.msra.mxu0 0.0
      %1352 = vmatprep.subr.mxu0 0.0
      %1353 = vmatpush2.msra.mxu0 0.0
      %1354 = vmatprep.subr.mxu0 0.0
      %1355 = vmatpush2.msra.mxu0 0.0
      %1356 = vmatprep.subr.mxu0 0.0
      %1357 = vmatpush2.msra.mxu0 0.0
      %1358 = vmatprep.subr.mxu0 0.0
      %1359 = vmatpush2.msra.mxu0 0.0
      %1360 = vmatprep.subr.mxu0 0.0
      %1361 = vmatpush2.msra.mxu0 0.0
      %1362 = vmatprep.subr.mxu0 0.0
      %1363 = vmatpush2.msra.mxu0 0.0
      %1364 = vmatprep.subr.mxu0 0.0
      %1365 = vmatpush2.msra.mxu0 0.0
      %1366 = vmatprep.subr.mxu0 0.0
      %1367 = vmatpush2.msra.mxu0 0.0
      %1368 = vmatprep.subr.mxu0 0.0
      %1369 = vmatpush2.msra.mxu0 0.0
      %1370 = vmatprep.mubr.f32.mxu0 0.0
      %1371 = vmatmul.mubr.f32.gmra.mxu0 %v1301
      %v1372 = vpop.f32.mrf.mxu0
      %v1373 = vadd.f32 0.0, %v1372
      %v1374 = vpop.f32.mrf.mxu0
      %1375 = vmatprep.mubr.f32.mxu0 0.0
      %1376 = vmatmul.mubr.f32.gmra.mxu0 %v1304
      %v1377 = vpop.f32.mrf.mxu0
      %v1378 = vadd.f32 0.0, %v1377
      %v1379 = vpop.f32.mrf.mxu0
      %1380 = vdwg.mxu0
      %v1381 = vld [vmem:[%s13] sm:$0xff]
      %v1382 = vld [vmem:[%s13 + $0x8] sm:$0xff]
      %v1383 = vld [vmem:[%s14] sm:$0xff]
      %v1384 = vld [vmem:[%s14 + $0x8] sm:$0xff]
      %v1385 = vsel %vm964, %v1373, 0.0
      %1386 = vadd.xlane.f32.xlu0 %v1385
      %v1387 = vpop.xlane.xlu0 %1386
      %v1388 = vsel %vm964, %v1378, 0.0
      %1389 = vadd.xlane.f32.xlu0 %v1388
      %v1390 = vpop.xlane.xlu0 %1389
      %v1391 = vmul.f32 %v1373, %v1373
      %v1392 = vmul.f32 %v1378, %v1378
      %v1393 = vsel %vm964, %v1391, 0.0
      %1394 = vadd.xlane.f32.xlu0 %v1393
      %v1395 = vpop.xlane.xlu0 %1394
      %v1396 = vsel %vm964, %v1392, 0.0
      %1397 = vadd.xlane.f32.xlu0 %v1396
      %v1398 = vpop.xlane.xlu0 %1397
      %v1399 = vmul.f32 %v1387, 0.015625
      %v1400 = vmul.f32 %v1390, 0.015625
      %v1401 = vmul.f32 %v1395, 0.015625
      %v1402 = vmul.f32 %v1398, 0.015625
      %v1403 = vmul.f32 %v1399, %v1399
      %v1404 = vmul.f32 %v1400, %v1400
      %v1405 = vsub.f32 %v1401, %v1403
      %v1406 = vsub.f32 %v1402, %v1404
      %v1407 = vmax.f32 %v1405, 0.0
      %v1408 = vmax.f32 %v1406, 0.0
      %v1409 = vadd.f32 %v1407, 1e-05
      %v1410 = vadd.f32 %v1408, 1e-05
      %v1411 = vrsqrt.pop %v1409
      %v1412 = vrsqrt.pop %v1410
      %v1413 = vmul.f32 %v1381, %v1411
      %v1414 = vmul.f32 %v1382, %v1412
      %v1415 = vmul.f32 %v1399, %v1413
      %v1416 = vmul.f32 %v1400, %v1414
      %v1417 = vsub.f32 %v1383, %v1415
      %v1418 = vsub.f32 %v1384, %v1416
      %1420 = vset.pattern.permute.xlu0 0
      %1421 = vperm.xlu0 %1420, %v1413
      %v1422 = vpop.permute.xlu0 %1421
      %1425 = vset.pattern.permute.xlu0 0
      %1426 = vperm.xlu0 %1425, %v1414
      %v1427 = vpop.permute.xlu0 %1426
      %v1429 = vmul.f32 %v1373, %v1422
      %v1430 = vmul.f32 %v1378, %v1427
      %1432 = vset.pattern.permute.xlu0 0
      %1433 = vperm.xlu0 %1432, %v1417
      %v1434 = vpop.permute.xlu0 %1433
      %1437 = vset.pattern.permute.xlu0 0
      %1438 = vperm.xlu0 %1437, %v1418
      %v1439 = vpop.permute.xlu0 %1438
      %v1441 = vadd.f32 %v1429, %v1434
      %v1442 = vadd.f32 %v1430, %v1439
      %v1443 = vmax.f32 %v1441, 0.0
      %v1444 = vmax.f32 %v1442, 0.0
      %v1445 = vmin.f32 %v1443, 6.0
      %v1446 = vmin.f32 %v1444, 6.0
      %v1447 = vld [vmem:[%s15] sm:$0xff]
      %v1448 = vld [vmem:[%s15 + $0x8] sm:$0xff]
      %v1449 = vld [vmem:[%s15 + $0x10] sm:$0xff]
      %v1450 = vld [vmem:[%s15 + $0x18] sm:$0xff]
      %v1451 = vld [vmem:[%s15 + $0x20] sm:$0xff]
      %v1452 = vld [vmem:[%s15 + $0x28] sm:$0xff]
      %v1453 = vld [vmem:[%s15 + $0x30] sm:$0xff]
      %v1454 = vld [vmem:[%s15 + $0x38] sm:$0xff]
      %v1455 = vld [vmem:[%s15 + $0x40] sm:$0xff]
      %v1456 = vld [vmem:[%s15 + $0x48] sm:$0xff]
      %v1457 = vld [vmem:[%s15 + $0x50] sm:$0xff]
      %v1458 = vld [vmem:[%s15 + $0x58] sm:$0xff]
      %v1459 = vld [vmem:[%s15 + $0x60] sm:$0xff]
      %v1460 = vld [vmem:[%s15 + $0x68] sm:$0xff]
      %v1461 = vld [vmem:[%s15 + $0x70] sm:$0xff]
      %v1462 = vld [vmem:[%s15 + $0x78] sm:$0xff]
      %v1463 = vld [vmem:[%s15 + $0x80] sm:$0xff]
      %v1464 = vld [vmem:[%s15 + $0x88] sm:$0xff]
      %1467 = vrot.lane.b32.xlu0 %v1445, 9
      %v1468 = vpop.permute.xlu0 %1467
      %1469 = vrot.lane.b32.xlu0 %v1446, 9
      %v1470 = vpop.permute.xlu0 %1469
      %v1473 = vsel %vm1048, 0.0, %v1468
      %v1474 = vsel %vm1048, 0.0, %v1470
      %v1475 = vmul.f32 %v1473, %v1059
      %v1476 = vmul.f32 %v1474, %v1059
      %1478 = vset.pattern.permute.xlu0 0
      %1479 = vperm.xlu0 %1478, %v1447
      %v1480 = vpop.permute.xlu0 %1479
      %1483 = vset.pattern.permute.xlu0 0
      %1484 = vperm.xlu0 %1483, %v1448
      %v1485 = vpop.permute.xlu0 %1484
      %v1487 = vmul.f32 %v1475, %v1480
      %v1488 = vmul.f32 %v1476, %v1485
      %1489 = vrot.lane.b32.xlu0 %v1445, 8
      %v1490 = vpop.permute.xlu0 %1489
      %1491 = vrot.lane.b32.xlu0 %v1446, 8
      %v1492 = vpop.permute.xlu0 %1491
      %v1495 = vsel %vm1072, 0.0, %v1490
      %v1496 = vsel %vm1072, 0.0, %v1492
      %v1497 = vmul.f32 %v1495, %v1078
      %v1498 = vmul.f32 %v1496, %v1078
      %1500 = vset.pattern.permute.xlu0 0
      %1501 = vperm.xlu0 %1500, %v1449
      %v1502 = vpop.permute.xlu0 %1501
      %1505 = vset.pattern.permute.xlu0 0
      %1506 = vperm.xlu0 %1505, %v1450
      %v1507 = vpop.permute.xlu0 %1506
      %v1509 = vmul.f32 %v1497, %v1502
      %v1510 = vmul.f32 %v1498, %v1507
      %v1511 = vadd.f32 %v1487, %v1509
      %v1512 = vadd.f32 %v1488, %v1510
      %1513 = vrot.lane.b32.xlu0 %v1445, 7
      %v1514 = vpop.permute.xlu0 %1513
      %1515 = vrot.lane.b32.xlu0 %v1446, 7
      %v1516 = vpop.permute.xlu0 %1515
      %vm1519 = vcmask 56320
      %v1520 = vsel %vm1519, 0.0, %v1514
      %v1521 = vsel %vm1519, 0.0, %v1516
      %vm1522 = vcmp.le.f32.partialorder %v656, 6.0
      %v1523 = vsel %vm1522, 1.0, 0.0
      %v1524 = vmul.f32 %v1051, %v1523
      %v1526 = vlaneseq
      %v1527 = vshrl.u32 %v1526, 7
      %v1528 = vsub.s32 0, %v1527
      %v1529 = vrot.slane %v1524, %v1528
      %v1531 = vmul.f32 %v1520, %v1529
      %v1532 = vmul.f32 %v1521, %v1529
      %1534 = vset.pattern.permute.xlu0 0
      %1535 = vperm.xlu0 %1534, %v1451
      %v1536 = vpop.permute.xlu0 %1535
      %1539 = vset.pattern.permute.xlu0 0
      %1540 = vperm.xlu0 %1539, %v1452
      %v1541 = vpop.permute.xlu0 %1540
      %v1543 = vmul.f32 %v1531, %v1536
      %v1544 = vmul.f32 %v1532, %v1541
      %v1545 = vadd.f32 %v1511, %v1543
      %v1546 = vadd.f32 %v1512, %v1544
      %1547 = vrot.lane.b32.xlu0 %v1445, 1
      %v1548 = vpop.permute.xlu0 %1547
      %1549 = vrot.lane.b32.xlu0 %v1446, 1
      %v1550 = vpop.permute.xlu0 %1549
      %v1553 = vsel %vm1104, 0.0, %v1548
      %v1554 = vsel %vm1104, 0.0, %v1550
      %v1555 = vmul.f32 %v1553, %v1110
      %v1556 = vmul.f32 %v1554, %v1110
      %1558 = vset.pattern.permute.xlu0 0
      %1559 = vperm.xlu0 %1558, %v1453
      %v1560 = vpop.permute.xlu0 %1559
      %1563 = vset.pattern.permute.xlu0 0
      %1564 = vperm.xlu0 %1563, %v1454
      %v1565 = vpop.permute.xlu0 %1564
      %v1567 = vmul.f32 %v1555, %v1560
      %v1568 = vmul.f32 %v1556, %v1565
      %v1569 = vadd.f32 %v1545, %v1567
      %v1570 = vadd.f32 %v1546, %v1568
      %1572 = vset.pattern.permute.xlu0 0
      %1573 = vperm.xlu0 %1572, %v1455
      %v1574 = vpop.permute.xlu0 %1573
      %1577 = vset.pattern.permute.xlu0 0
      %1578 = vperm.xlu0 %1577, %v1456
      %v1579 = vpop.permute.xlu0 %1578
      %v1581 = vmul.f32 %v1445, %v1574
      %v1582 = vmul.f32 %v1446, %v1579
      %v1583 = vadd.f32 %v1569, %v1581
      %v1584 = vadd.f32 %v1570, %v1582
      %1585 = vrot.lane.b32.xlu0 %v1445, 127
      %v1586 = vpop.permute.xlu0 %1585
      %1587 = vrot.lane.b32.xlu0 %v1446, 127
      %v1588 = vpop.permute.xlu0 %1587
      %vm1591 = vcmask 515072
      %v1592 = vsel %vm1591, %v1586, 0.0
      %v1593 = vsel %vm1591, %v1588, 0.0
      %v1595 = vlaneseq
      %v1596 = vshrl.u32 %v1595, 7
      %v1597 = vsub.s32 0, %v1596
      %v1598 = vrot.slane %v1523, %v1597
      %v1600 = vmul.f32 %v1592, %v1598
      %v1601 = vmul.f32 %v1593, %v1598
      %1603 = vset.pattern.permute.xlu0 0
      %1604 = vperm.xlu0 %1603, %v1457
      %v1605 = vpop.permute.xlu0 %1604
      %1608 = vset.pattern.permute.xlu0 0
      %1609 = vperm.xlu0 %1608, %v1458
      %v1610 = vpop.permute.xlu0 %1609
      %v1612 = vmul.f32 %v1600, %v1605
      %v1613 = vmul.f32 %v1601, %v1610
      %v1614 = vadd.f32 %v1583, %v1612
      %v1615 = vadd.f32 %v1584, %v1613
      %1616 = vrot.lane.b32.xlu0 %v1445, 121
      %v1617 = vpop.permute.xlu0 %1616
      %1618 = vrot.lane.b32.xlu0 %v1446, 121
      %v1619 = vpop.permute.xlu0 %1618
      %vm1622 = vcmask 465920
      %v1623 = vsel %vm1622, %v1617, 0.0
      %v1624 = vsel %vm1622, %v1619, 0.0
      %vm1625 = vcmp.le.f32.partialorder %v655, 6.0
      %v1626 = vsel %vm1625, 1.0, 0.0
      %v1627 = vmul.f32 %v1626, %v1053
      %v1629 = vlaneseq
      %v1630 = vshrl.u32 %v1629, 7
      %v1631 = vsub.s32 0, %v1630
      %v1632 = vrot.slane %v1627, %v1631
      %v1634 = vmul.f32 %v1623, %v1632
      %v1635 = vmul.f32 %v1624, %v1632
      %1637 = vset.pattern.permute.xlu0 0
      %1638 = vperm.xlu0 %1637, %v1459
      %v1639 = vpop.permute.xlu0 %1638
      %1642 = vset.pattern.permute.xlu0 0
      %1643 = vperm.xlu0 %1642, %v1460
      %v1644 = vpop.permute.xlu0 %1643
      %v1646 = vmul.f32 %v1634, %v1639
      %v1647 = vmul.f32 %v1635, %v1644
      %v1648 = vadd.f32 %v1614, %v1646
      %v1649 = vadd.f32 %v1615, %v1647
      %1650 = vrot.lane.b32.xlu0 %v1445, 120
      %v1651 = vpop.permute.xlu0 %1650
      %1652 = vrot.lane.b32.xlu0 %v1446, 120
      %v1653 = vpop.permute.xlu0 %1652
      %vm1656 = vcmask 457728
      %v1657 = vsel %vm1656, %v1651, 0.0
      %v1658 = vsel %vm1656, %v1653, 0.0
      %v1660 = vlaneseq
      %v1661 = vshrl.u32 %v1660, 7
      %v1662 = vsub.s32 0, %v1661
      %v1663 = vrot.slane %v1626, %v1662
      %v1665 = vmul.f32 %v1657, %v1663
      %v1666 = vmul.f32 %v1658, %v1663
      %1668 = vset.pattern.permute.xlu0 0
      %1669 = vperm.xlu0 %1668, %v1461
      %v1670 = vpop.permute.xlu0 %1669
      %1673 = vset.pattern.permute.xlu0 0
      %1674 = vperm.xlu0 %1673, %v1462
      %v1675 = vpop.permute.xlu0 %1674
      %v1677 = vmul.f32 %v1665, %v1670
      %v1678 = vmul.f32 %v1666, %v1675
      %v1679 = vadd.f32 %v1648, %v1677
      %v1680 = vadd.f32 %v1649, %v1678
      %1681 = vrot.lane.b32.xlu0 %v1445, 119
      %v1682 = vpop.permute.xlu0 %1681
      %1683 = vrot.lane.b32.xlu0 %v1446, 119
      %v1684 = vpop.permute.xlu0 %1683
      %vm1687 = vcmask 449536
      %v1688 = vsel %vm1687, %v1682, 0.0
      %v1689 = vsel %vm1687, %v1684, 0.0
      %v1690 = vmul.f32 %v1626, %v1523
      %v1692 = vlaneseq
      %v1693 = vshrl.u32 %v1692, 7
      %v1694 = vsub.s32 0, %v1693
      %v1695 = vrot.slane %v1690, %v1694
      %v1697 = vmul.f32 %v1688, %v1695
      %v1698 = vmul.f32 %v1689, %v1695
      %1700 = vset.pattern.permute.xlu0 0
      %1701 = vperm.xlu0 %1700, %v1463
      %v1702 = vpop.permute.xlu0 %1701
      %1705 = vset.pattern.permute.xlu0 0
      %1706 = vperm.xlu0 %1705, %v1464
      %v1707 = vpop.permute.xlu0 %1706
      %v1709 = vmul.f32 %v1697, %v1702
      %v1710 = vmul.f32 %v1698, %v1707
      %v1711 = vadd.f32 %v1679, %v1709
      %v1712 = vadd.f32 %v1680, %v1710
      %v1713 = vld [vmem:[%s16] sm:$0xff]
      %v1714 = vld [vmem:[%s16 + $0x8] sm:$0xff]
      %v1715 = vld [vmem:[%s17] sm:$0xff]
      %v1716 = vld [vmem:[%s17 + $0x8] sm:$0xff]
      %v1717 = vsel %vm964, %v1711, 0.0
      %1718 = vadd.xlane.f32.xlu0 %v1717
      %v1719 = vpop.xlane.xlu0 %1718
      %v1720 = vsel %vm964, %v1712, 0.0
      %1721 = vadd.xlane.f32.xlu0 %v1720
      %v1722 = vpop.xlane.xlu0 %1721
      %v1723 = vmul.f32 %v1711, %v1711
      %v1724 = vmul.f32 %v1712, %v1712
      %v1725 = vsel %vm964, %v1723, 0.0
      %1726 = vadd.xlane.f32.xlu0 %v1725
      %v1727 = vpop.xlane.xlu0 %1726
      %v1728 = vsel %vm964, %v1724, 0.0
      %1729 = vadd.xlane.f32.xlu0 %v1728
      %v1730 = vpop.xlane.xlu0 %1729
      %v1731 = vmul.f32 %v1719, 0.015625
      %v1732 = vmul.f32 %v1722, 0.015625
      %v1733 = vmul.f32 %v1727, 0.015625
      %v1734 = vmul.f32 %v1730, 0.015625
      %v1735 = vmul.f32 %v1731, %v1731
      %v1736 = vmul.f32 %v1732, %v1732
      %v1737 = vsub.f32 %v1733, %v1735
      %v1738 = vsub.f32 %v1734, %v1736
      %v1739 = vmax.f32 %v1737, 0.0
      %v1740 = vmax.f32 %v1738, 0.0
      %v1741 = vadd.f32 %v1739, 1e-05
      %v1742 = vadd.f32 %v1740, 1e-05
      %v1743 = vrsqrt.pop %v1741
      %v1744 = vrsqrt.pop %v1742
      %v1745 = vmul.f32 %v1713, %v1743
      %v1746 = vmul.f32 %v1714, %v1744
      %v1747 = vmul.f32 %v1731, %v1745
      %v1748 = vmul.f32 %v1732, %v1746
      %v1749 = vsub.f32 %v1715, %v1747
      %v1750 = vsub.f32 %v1716, %v1748
      %1752 = vset.pattern.permute.xlu0 0
      %1753 = vperm.xlu0 %1752, %v1745
      %v1754 = vpop.permute.xlu0 %1753
      %1757 = vset.pattern.permute.xlu0 0
      %1758 = vperm.xlu0 %1757, %v1746
      %v1759 = vpop.permute.xlu0 %1758
      %v1761 = vmul.f32 %v1711, %v1754
      %v1762 = vmul.f32 %v1712, %v1759
      %1764 = vset.pattern.permute.xlu0 0
      %1765 = vperm.xlu0 %1764, %v1749
      %v1766 = vpop.permute.xlu0 %1765
      %1769 = vset.pattern.permute.xlu0 0
      %1770 = vperm.xlu0 %1769, %v1750
      %v1771 = vpop.permute.xlu0 %1770
      %v1773 = vadd.f32 %v1761, %v1766
      %v1774 = vadd.f32 %v1762, %v1771
      %v1775 = vmax.f32 %v1773, 0.0
      %v1776 = vmax.f32 %v1774, 0.0
      %v1777 = vmin.f32 %v1775, 6.0
      %v1778 = vmin.f32 %v1776, 6.0
      %v1779 = vld [vmem:[%s18] sm:$0xff]
      %vm1780 = vcmask 130048
      %v1782 = vsel %vm1780, %v1779, 0
      %1784 = vmatprep.subr.mxu0 0.0
      %1785 = vmatpush1.msra.mxu0 0.0
      %1786 = vmatprep.subr.mxu0 0.0
      %1787 = vmatpush1.msra.mxu0 0.0
      %1788 = vmatprep.subr.mxu0 0.0
      %1789 = vmatpush1.msra.mxu0 0.0
      %1790 = vmatprep.subr.mxu0 0.0
      %1791 = vmatpush1.msra.mxu0 0.0
      %1792 = vmatprep.subr.mxu0 0.0
      %1793 = vmatpush1.msra.mxu0 0.0
      %1794 = vmatprep.subr.mxu0 0.0
      %1795 = vmatpush1.msra.mxu0 0.0
      %1796 = vmatprep.subr.mxu0 0.0
      %1797 = vmatpush1.msra.mxu0 0.0
      %1798 = vmatprep.subr.mxu0 0.0
      %1799 = vmatpush1.msra.mxu0 0.0
      %1800 = vmatprep.subr.mxu0 0.0
      %1801 = vmatpush1.msra.mxu0 0.0
      %1802 = vmatprep.subr.mxu0 0.0
      %1803 = vmatpush1.msra.mxu0 0.0
      %1804 = vmatprep.subr.mxu0 0.0
      %1805 = vmatpush1.msra.mxu0 0.0
      %1806 = vmatprep.subr.mxu0 0.0
      %1807 = vmatpush1.msra.mxu0 0.0
      %1808 = vmatprep.subr.mxu0 0.0
      %1809 = vmatpush1.msra.mxu0 0.0
      %1810 = vmatprep.subr.mxu0 0.0
      %1811 = vmatpush1.msra.mxu0 0.0
      %1812 = vmatprep.subr.mxu0 0.0
      %1813 = vmatpush1.msra.mxu0 %v1778
      %1814 = vmatprep.subr.mxu0 0.0
      %1815 = vmatpush1.msra.mxu0 %v1777
      %1816 = vmatprep.subr.mxu0 0.0
      %1817 = vmatpush2.msra.mxu0 0.0
      %1818 = vmatprep.subr.mxu0 0.0
      %1819 = vmatpush2.msra.mxu0 0.0
      %1820 = vmatprep.subr.mxu0 0.0
      %1821 = vmatpush2.msra.mxu0 0.0
      %1822 = vmatprep.subr.mxu0 0.0
      %1823 = vmatpush2.msra.mxu0 0.0
      %1824 = vmatprep.subr.mxu0 0.0
      %1825 = vmatpush2.msra.mxu0 0.0
      %1826 = vmatprep.subr.mxu0 0.0
      %1827 = vmatpush2.msra.mxu0 0.0
      %1828 = vmatprep.subr.mxu0 0.0
      %1829 = vmatpush2.msra.mxu0 0.0
      %1830 = vmatprep.subr.mxu0 0.0
      %1831 = vmatpush2.msra.mxu0 0.0
      %1832 = vmatprep.subr.mxu0 0.0
      %1833 = vmatpush2.msra.mxu0 0.0
      %1834 = vmatprep.subr.mxu0 0.0
      %1835 = vmatpush2.msra.mxu0 0.0
      %1836 = vmatprep.subr.mxu0 0.0
      %1837 = vmatpush2.msra.mxu0 0.0
      %1838 = vmatprep.subr.mxu0 0.0
      %1839 = vmatpush2.msra.mxu0 0.0
      %1840 = vmatprep.subr.mxu0 0.0
      %1841 = vmatpush2.msra.mxu0 0.0
      %1842 = vmatprep.subr.mxu0 0.0
      %1843 = vmatpush2.msra.mxu0 0.0
      %1844 = vmatprep.subr.mxu0 0.0
      %1845 = vmatpush2.msra.mxu0 0.0
      %1846 = vmatprep.subr.mxu0 0.0
      %1847 = vmatpush2.msra.mxu0 0.0
      %1848 = vmatprep.mubr.f32.mxu0 0.0
      %1849 = vmatmul.mubr.f32.gmra.mxu0 %v1782
      %v1850 = vpop.f32.mrf.mxu0
      %v1851 = vadd.f32 0.0, %v1850
      %v1852 = vpop.f32.mrf.mxu0
      %1853 = vdwg.mxu0
      %v1854 = vld [vmem:[%s19] sm:$0xff]
      %v1855 = vld [vmem:[%s20] sm:$0xff]
      %v1856 = vsel %vm964, %v1851, 0.0
      %1857 = vadd.xlane.f32.xlu0 %v1856
      %v1858 = vpop.xlane.xlu0 %1857
      %v1859 = vmul.f32 %v1851, %v1851
      %v1860 = vsel %vm964, %v1859, 0.0
      %1861 = vadd.xlane.f32.xlu0 %v1860
      %v1862 = vpop.xlane.xlu0 %1861
      %v1863 = vmul.f32 %v1858, 0.015625
      %v1864 = vmul.f32 %v1862, 0.015625
      %v1865 = vmul.f32 %v1863, %v1863
      %v1866 = vsub.f32 %v1864, %v1865
      %v1867 = vmax.f32 %v1866, 0.0
      %v1868 = vadd.f32 %v1867, 1e-05
      %v1869 = vrsqrt.pop %v1868
      %v1870 = vmul.f32 %v1854, %v1869
      %v1871 = vmul.f32 %v1863, %v1870
      %v1872 = vsub.f32 %v1855, %v1871
      %1874 = vset.pattern.permute.xlu0 0
      %1875 = vperm.xlu0 %1874, %v1870
      %v1876 = vpop.permute.xlu0 %1875
      %v1878 = vmul.f32 %v1851, %v1876
      %1880 = vset.pattern.permute.xlu0 0
      %1881 = vperm.xlu0 %1880, %v1872
      %v1882 = vpop.permute.xlu0 %1881
      %v1884 = vadd.f32 %v1878, %v1882
      %1885 = vst.msk [vmem:[%s654] sm:$0xff] %vm964, %v1884
      %p1886 = scmp.lt.s32.totalorder %s32, 1
      %s1887 = scalar_select %p1886, %s32, 1
      %s1888 = smul.addr %s1887, 8
      %s1889 = scalar_lea.vmem %s21, %s1888
      // Predicated region
      $region105: #{_forward.1} parent=103 // pred_check
        %p1890 = pneg %p496
      $region106: #{_forward.1} parent=103 // pred_check_branch
        %1892 = sbr.rel (%p1890) target = $region108
      $region107: #{_forward.1} parent=103 // pred_region
        _
      $region108: #{_forward.1} parent=103 // pred_fallthru
        _
    $region104: #{_forward.1} parent=5 // pred_fallthru
      _
    %p1893 = scmp.le.s32.totalorder 2, %s27
    // Predicated region
    $region109: #{_forward.1} parent=5 // pred_check
      %p1894 = pneg %p1893
    $region110: #{_forward.1} parent=5 // pred_check_branch
      %1896 = sbr.rel (%p1894) target = $region112
    $region111: #{_forward.1} parent=5 // pred_region
      %s1897 = ssub.s32 %s27, 2
      // Predicated region
      $region113: #{_forward.1} parent=111 // pred_check
        %p1898 = pneg %p502
      $region114: #{_forward.1} parent=111 // pred_check_branch
        %1900 = sbr.rel (%p1898) target = $region116
      $region115: #{_forward.1} parent=111 // pred_region
        %p1901 = scmp.lt.s32.totalorder %s33, 1
        %s1902 = scalar_select %p1901, %s33, 1
        %s1903 = smul.addr %s1902, 8
        %s1904 = scalar_lea.vmem %s21, %s1903
      $region116: #{_forward.1} parent=111 // pred_fallthru
        _
    $region112: #{_forward.1} parent=5 // pred_fallthru
      _
  $region6: #{_forward.1} parent=0 // loop_footer
    %s31 = sadd.s32 1, %s27
  $region7: #{_forward.1} parent=0 // loop_footer_branch
    %26 = sbr.rel target = $region3
  $region8: #{_forward.1} parent=0 // loop_exit
    _

</llo_original>
